<compile_context>
chip_gen: v7x
topology: tpu7x:2x2x1
jax: 0.10.0
libtpu: 0.0.40
codegen_flags: <defaults>
</compile_context>

<pallas_src>
import math
import functools

import jax
import jax.numpy as jnp
from jax import lax
from jax.experimental import pallas as pl
from jax.experimental.pallas import tpu as pltpu


# ----------------------------------------------------------------------------
# small math helpers (usable both inside the kernel and in the pure-JAX ref)
# ----------------------------------------------------------------------------
def _softplus(x):
    return jnp.maximum(x, 0.0) + jnp.log(1.0 + jnp.exp(-jnp.abs(x)))


def _silu(x):
    return x * jax.nn.sigmoid(x)


def _identity(n, dtype=jnp.float32):
    r = lax.broadcasted_iota(jnp.int32, (n, n), 0)
    c = lax.broadcasted_iota(jnp.int32, (n, n), 1)
    return jnp.where(r == c, 1.0, 0.0).astype(dtype)


def _reversal(n, dtype=jnp.float32):
    # permutation matrix P with P @ x == flip(x, axis=0); exact in f32.
    r = lax.broadcasted_iota(jnp.int32, (n, n), 0)
    c = lax.broadcasted_iota(jnp.int32, (n, n), 1)
    return jnp.where(r + c == n - 1, 1.0, 0.0).astype(dtype)


# ----------------------------------------------------------------------------
# fused BiMamba kernel: one grid step = (direction, batch element)
# ----------------------------------------------------------------------------
def bimamba_kernel(x_ref, w_in_ref, conv_w_ref, w_x_ref, a_ref, vecs_ref,
                   w_out_ref, o_ref,
                   xw_s, delta_s, du_s, b_s, c_s, y_s):
    L, d_model = xw_s.shape
    d_state = a_ref.shape[1]
    d_inner = a_ref.shape[2]
    d_conv = conv_w_ref.shape[1]
    direction = pl.program_id(0)

    # ---- direction handling: backward block sees the time-reversed sequence ----
    @pl.when(direction == 0)
    def _():
        xw_s[...] = x_ref[0]

    @pl.when(direction == 1)
    def _():
        xw_s[...] = jnp.dot(_reversal(L), x_ref[0],
                            preferred_element_type=jnp.float32)

    x = xw_s[...]                                                # (L, d_model)

    # ---- fused in_proj: [x-branch | gating residual] in one matmul ----
    xz = jnp.dot(x, w_in_ref[0], preferred_element_type=jnp.float32)  # (L, 2*d_inner)
    xi = xz[:, :d_inner]
    res = xz[:, d_inner:]

    # small packed vectors, loaded once (hoisted broadcasts)
    taps = conv_w_ref[0]                  # (d_conv, d_inner) depthwise taps
    v = vecs_ref[0]                       # (3, d_inner): [conv_b, dt_bias, D]
    conv_b = v[0:1, :]
    b_dt = v[1:2, :]
    d_vec = v[2:3, :]

    # ---- depthwise causal conv1d via sublane rolls (no padded-copy slices) ----
    # out[t] = sum_j taps[d_conv-1-j] * x[t-j],   x[t<0] = 0
    acc = xi * taps[d_conv - 1:d_conv, :]
    row_idx = lax.broadcasted_iota(jnp.int32, (L, d_inner), 0)
    for j in range(1, d_conv):                       # unrolled (d_conv-1 taps)
        shifted = pltpu.roll(xi, shift=j, axis=0)    # shifted[t] = xi[t - j]
        shifted = jnp.where(row_idx >= j, shifted, 0.0)
        acc = acc + shifted * taps[d_conv - 1 - j:d_conv - j, :]
    u = _silu(acc + conv_b)                                      # (L, d_inner)

    # ---- fused x_proj: one matmul producing [dt | B | C] ----
    dtbc = jnp.dot(u, w_x_ref[0], preferred_element_type=jnp.float32)
    delta = _softplus(dtbc[:, :d_inner] + b_dt)                  # (L, d_inner)
    delta_s[...] = delta
    du_s[...] = delta * u
    b_s[...] = dtbc[:, d_inner:d_inner + d_state]                # (L, d_state)
    c_s[...] = dtbc[:, d_inner + d_state:]                       # (L, d_state)
    y_s[...] = u * d_vec            # D*u skip term, hoisted out of the scan

    # ---- selective scan: 8 timesteps per block, h carried as a loop value ----
    a_neg = a_ref[0]                # (d_state, d_inner), negative A (transposed)
    eye_s = _identity(d_state)

    def blk_body(blk, h):
        t0 = pl.multiple_of(blk * 8, 8)
        d_blk = delta_s[pl.ds(t0, 8), :]                         # (8, d_inner)
        du_blk = du_s[pl.ds(t0, 8), :]                           # (8, d_inner)
        # transpose the tiny (8, d_state) B/C blocks once per block via an
        # identity matmul in "NT" form (natively supported transposed-rhs).
        bT = lax.dot_general(eye_s, b_s[pl.ds(t0, 8), :],
                             (((1,), (1,)), ((), ())),
                             preferred_element_type=jnp.float32)  # (d_state, 8)
        cT = lax.dot_general(eye_s, c_s[pl.ds(t0, 8), :],
                             (((1,), (1,)), ((), ())),
                             preferred_element_type=jnp.float32)  # (d_state, 8)
        rows = []
        for i in range(8):                                       # unrolled
            da = jnp.exp(d_blk[i:i + 1, :] * a_neg)              # (d_state, d_inner)
            h = da * h + bT[:, i:i + 1] * du_blk[i:i + 1, :]     # VPU outer product
            rows.append(jnp.sum(cT[:, i:i + 1] * h, axis=0,
                                keepdims=True))                  # sublane reduce
        # one 8-sublane store per block (adds to the pre-filled D*u term)
        y_s[pl.ds(t0, 8), :] = y_s[pl.ds(t0, 8), :] + jnp.concatenate(rows, axis=0)
        return h

    lax.fori_loop(0, L // 8, blk_body,
                  jnp.zeros((d_state, d_inner), jnp.float32))

    # ---- gate + out_proj ----
    out_val = jnp.dot(y_s[...] * _silu(res), w_out_ref[0],
                      preferred_element_type=jnp.float32)        # (L, d_model)

    @pl.when(direction == 0)
    def _():
        o_ref[0, 0] = out_val

    @pl.when(direction == 1)
    def _():
        # un-reverse the backward direction's output inside the kernel
        o_ref[0, 0] = jnp.dot(_reversal(L), out_val,
                              preferred_element_type=jnp.float32)


# ----------------------------------------------------------------------------
# pallas_call wrapper
# ----------------------------------------------------------------------------
def _bimamba_pallas(x_bld, w_in, conv_w, w_x, a_t, vecs, w_out):
    """x_bld: (B, L, d_model); weights stacked with leading direction dim 2."""
    B, L, d_model = x_bld.shape
    d_state, d_inner = a_t.shape[1], a_t.shape[2]
    assert L % 8 == 0, "sequence length must be a multiple of 8"

    def wspec(arr):
        nt = arr.ndim - 1
        return pl.BlockSpec((1,) + arr.shape[1:],
                            lambda d, b, nt=nt: (d,) + (0,) * nt)

    in_specs = [pl.BlockSpec((1, L, d_model), lambda d, b: (b, 0, 0))]
    in_specs += [wspec(w) for w in (w_in, conv_w, w_x, a_t, vecs, w_out)]
    out_spec = pl.BlockSpec((1, 1, L, d_model), lambda d, b: (d, b, 0, 0))

    scratch = [
        pltpu.VMEM((L, d_model), jnp.float32),   # direction-handled input
        pltpu.VMEM((L, d_inner), jnp.float32),   # delta
        pltpu.VMEM((L, d_inner), jnp.float32),   # delta * u
        pltpu.VMEM((L, d_state), jnp.float32),   # B
        pltpu.VMEM((L, d_state), jnp.float32),   # C
        pltpu.VMEM((L, d_inner), jnp.float32),   # y (pre-filled with D*u)
    ]

    return pl.pallas_call(
        bimamba_kernel,
        out_shape=jax.ShapeDtypeStruct((2, B, L, d_model), jnp.float32),
        grid=(2, B),
        in_specs=in_specs,
        out_specs=out_spec,
        scratch_shapes=scratch,
        compiler_params=pltpu.CompilerParams(
            dimension_semantics=("parallel", "parallel"),
            vmem_limit_bytes=32 * 1024 * 1024),
    )(x_bld, w_in, conv_w, w_x, a_t, vecs, w_out)


# ----------------------------------------------------------------------------
# parameter init (same parameterization as before) + fusion for the kernel
# ----------------------------------------------------------------------------
def init_mamba_params(key, d_model, d_state, d_conv=4, expand=2):
    d_inner = expand * d_model
    dt_rank = max(1, math.ceil(d_model / 16))
    ks = jax.random.split(key, 9)

    def uni(k, shape, fan_in):
        s = 1.0 / math.sqrt(fan_in)
        return jax.random.uniform(k, shape, jnp.float32, -s, s)

    p = {}
    p["w_in_x"] = uni(ks[0], (d_model, d_inner), d_model)
    p["w_in_r"] = uni(ks[1], (d_model, d_inner), d_model)
    p["conv_w"] = uni(ks[2], (d_conv, d_inner), d_conv)      # depthwise taps
    p["conv_b"] = uni(ks[3], (1, d_inner), d_conv)
    p["w_dtx"] = uni(ks[4], (d_inner, dt_rank), d_inner)
    p["w_b"] = uni(ks[5], (d_inner, d_state), d_inner)
    p["w_c"] = uni(ks[6], (d_inner, d_state), d_inner)
    p["w_dt"] = uni(ks[7], (dt_rank, d_inner), dt_rank)
    p["b_dt"] = jnp.full((1, d_inner), 0.01, jnp.float32)
    # A = -exp(A_log), A_log = log(1..d_state) per channel; stored transposed
    a = jnp.arange(1, d_state + 1, dtype=jnp.float32)
    p["a_t"] = -jnp.broadcast_to(a[:, None], (d_state, d_inner)).astype(jnp.float32)
    p["d"] = jnp.ones((1, d_inner), jnp.float32)
    p["w_out"] = uni(ks[8], (d_inner, d_model), d_inner)
    return p


_dot_hp = functools.partial(jnp.dot, precision=jax.lax.Precision.HIGHEST)


def _fuse_mamba_params(p):
    w_in = jnp.concatenate([p["w_in_x"], p["w_in_r"]], axis=1)     # (d_model, 2*d_inner)
    # dt_rank is tiny here -> pre-fold the low-rank dt projection (reassociation)
    w_dt_full = _dot_hp(p["w_dtx"], p["w_dt"])                     # (d_inner, d_inner)
    w_x = jnp.concatenate([w_dt_full, p["w_b"], p["w_c"]], axis=1)  # (d_inner, d_inner+2*d_state)
    vecs = jnp.concatenate([p["conv_b"], p["b_dt"], p["d"]], axis=0)  # (3, d_inner)
    return w_in, p["conv_w"], w_x, p["a_t"], vecs, p["w_out"]


def _fuse_and_stack(pf, pb):
    f = _fuse_mamba_params(pf)
    b = _fuse_mamba_params(pb)
    return tuple(jnp.stack([wf, wb], axis=0) for wf, wb in zip(f, b))


def bimamba_forward(x_bcl, params_fwd, params_bwd):
    """x_bcl: (B, d_model, L) -> (B, 2*d_model, L)   (matches PyTorch BiMamba)."""
    x = jnp.transpose(x_bcl, (0, 2, 1))                 # (B, L, d_model)
    weights = _fuse_and_stack(params_fwd, params_bwd)
    out = _bimamba_pallas(x, *weights)                  # (2, B, L, d_model)
    y = jnp.concatenate([out[0], out[1]], axis=-1)      # (B, L, 2*d_model)
    return jnp.transpose(y, (0, 2, 1))                  # (B, 2*d_model, L)


# ----------------------------------------------------------------------------
# pure-JAX reference (mirrors the PyTorch formulation) for a correctness check
# ----------------------------------------------------------------------------
def _mamba_reference(x, p):
    d_conv, d_inner = p["conv_w"].shape
    d_state = p["w_b"].shape[1]
    L = x.shape[1]
    xi = _dot_hp(x, p["w_in_x"])
    res = _dot_hp(x, p["w_in_r"])
    xpad = jnp.pad(xi, ((0, 0), (d_conv - 1, 0), (0, 0)))
    conv = sum(xpad[:, k:k + L, :] * p["conv_w"][k] for k in range(d_conv))
    u = _silu(conv + p["conv_b"][0])
    dt = _dot_hp(_dot_hp(u, p["w_dtx"]), p["w_dt"]) + p["b_dt"][0]
    delta = _softplus(dt)
    Bm = _dot_hp(u, p["w_b"])
    Cm = _dot_hp(u, p["w_c"])
    A = p["a_t"]
    D = p["d"][0]

    def step(h, inp):
        delta_t, u_t, b_t, c_t = inp
        da = jnp.exp(delta_t[None, :] * A)
        h = da * h + b_t[:, None] * (delta_t * u_t)[None, :]
        y = (c_t[:, None] * h).sum(0) + D * u_t
        return h, y

    def scan_one(u_b, delta_b, B_b, C_b):
        h0 = jnp.zeros((d_state, d_inner), jnp.float32)
        _, ys = jax.lax.scan(step, h0, (delta_b, u_b, B_b, C_b))
        return ys

    ys = jax.vmap(scan_one)(u, delta, Bm, Cm)
    return _dot_hp(ys * _silu(res), p["w_out"])


def bimamba_reference(x_bcl, pf, pb):
    x = jnp.transpose(x_bcl, (0, 2, 1))
    yf = _mamba_reference(x, pf)
    yb = jnp.flip(_mamba_reference(jnp.flip(x, 1), pb), 1)
    return jnp.transpose(jnp.concatenate([yf, yb], -1), (0, 2, 1))


# ----------------------------------------------------------------------------
if __name__ == "__main__":
    B, d_model, n_state, L = 2, 16, 8, 16
    key = jax.random.PRNGKey(0)
    k_x, k_f, k_b = jax.random.split(key, 3)

    x = jax.random.normal(k_x, (B, d_model, L), jnp.float32)
    params_fwd = init_mamba_params(k_f, d_model, n_state)
    params_bwd = init_mamba_params(k_b, d_model, n_state)

    out = jax.jit(bimamba_forward)(x, params_fwd, params_bwd)
    out = jax.block_until_ready(out)
    assert out.shape == (B, 2 * d_model, L), out.shape
    assert bool(jnp.all(jnp.isfinite(out)))

    ref = jax.jit(bimamba_reference)(x, params_fwd, params_bwd)
    ref = jax.block_until_ready(ref)
    err = float(jnp.max(jnp.abs(out - ref)))
    assert err < 2e-2, f"kernel/reference mismatch: max abs err = {err}"

    print("KERNEL_OK")
</pallas_src>

<mosaic_0001>
module attributes {stable_mosaic.version = 11 : i64} {
  func.func @bimamba_kernel(%arg0: i32, %arg1: i32, %arg2: memref<1x16x16xf32, #tpu.memory_space<vmem>>, %arg3: memref<1x16x64xf32, #tpu.memory_space<vmem>>, %arg4: memref<1x4x32xf32, #tpu.memory_space<vmem>>, %arg5: memref<1x32x48xf32, #tpu.memory_space<vmem>>, %arg6: memref<1x8x32xf32, #tpu.memory_space<vmem>>, %arg7: memref<1x3x32xf32, #tpu.memory_space<vmem>>, %arg8: memref<1x32x16xf32, #tpu.memory_space<vmem>>, %arg9: memref<1x1x16x16xf32, #tpu.memory_space<vmem>>, %arg10: memref<16x16xf32, #tpu.memory_space<vmem>>, %arg11: memref<16x32xf32, #tpu.memory_space<vmem>>, %arg12: memref<16x32xf32, #tpu.memory_space<vmem>>, %arg13: memref<16x8xf32, #tpu.memory_space<vmem>>, %arg14: memref<16x8xf32, #tpu.memory_space<vmem>>, %arg15: memref<16x32xf32, #tpu.memory_space<vmem>>) attributes {dimension_semantics = [#tpu.dimension_semantics<parallel>, #tpu.dimension_semantics<parallel>], iteration_bounds = array<i64: 2, 2>, scalar_prefetch = 0 : i64, scratch_operands = 6 : i64, tpu.core_type = #tpu.core_type<tc>, window_params = [{transform_indices = @transform_0, window_bounds = array<i64: 1, 16, 16>}, {transform_indices = @transform_1, window_bounds = array<i64: 1, 16, 64>}, {transform_indices = @transform_2, window_bounds = array<i64: 1, 4, 32>}, {transform_indices = @transform_3, window_bounds = array<i64: 1, 32, 48>}, {transform_indices = @transform_4, window_bounds = array<i64: 1, 8, 32>}, {transform_indices = @transform_5, window_bounds = array<i64: 1, 3, 32>}, {transform_indices = @transform_6, window_bounds = array<i64: 1, 32, 16>}, {transform_indices = @transform_7, window_bounds = array<i64: 1, 1, 16, 16>}]} {
    %c0_i32 = arith.constant 0 : i32
    %0 = arith.cmpi eq, %arg0, %c0_i32 : i32
    %1 = arith.extui %0 : i1 to i32
    %c0_i32_0 = arith.constant 0 : i32
    %2 = arith.cmpi ne, %1, %c0_i32_0 : i32
    scf.if %2 {
      %c0_58 = arith.constant 0 : index
      %c0_59 = arith.constant 0 : index
      %c0_60 = arith.constant 0 : index
      %112 = vector.load %arg2[%c0_58, %c0_59, %c0_60] : memref<1x16x16xf32, #tpu.memory_space<vmem>>, vector<1x16x16xf32>
      %113 = vector.shape_cast %112 : vector<1x16x16xf32> to vector<16x16xf32>
      %c0_61 = arith.constant 0 : index
      %c0_62 = arith.constant 0 : index
      %114 = vector.load %arg10[%c0_61, %c0_62] : memref<16x16xf32, #tpu.memory_space<vmem>>, vector<16x16xf32>
      tpu.vector_store %arg10[%c0_61, %c0_62], %113 {strides = array<i32>} : memref<16x16xf32, #tpu.memory_space<vmem>>, vector<16x16xf32>,
    } else {
    }
    %c1_i32 = arith.constant 1 : i32
    %3 = arith.cmpi eq, %arg0, %c1_i32 : i32
    %4 = arith.extui %3 : i1 to i32
    %c0_i32_1 = arith.constant 0 : i32
    %5 = arith.cmpi ne, %4, %c0_i32_1 : i32
    scf.if %5 {
      %112 = tpu.iota {dimensions = array<i32: 0>} : vector<16x16xi32>
      %113 = tpu.iota {dimensions = array<i32: 1>} : vector<16x16xi32>
      %114 = arith.addi %112, %113 : vector<16x16xi32>
      %c15_i32 = arith.constant 15 : i32
      %115 = vector.broadcast %c15_i32 : i32 to vector<16x16xi32>
      %116 = arith.cmpi eq, %114, %115 : vector<16x16xi32>
      %cst_58 = arith.constant 1.000000e+00 : f32
      %cst_59 = arith.constant 0.000000e+00 : f32
      %117 = vector.broadcast %cst_58 : f32 to vector<16x16xf32>
      %118 = vector.broadcast %cst_59 : f32 to vector<16x16xf32>
      %119 = arith.select %116, %117, %118 : vector<16x16xi1>, vector<16x16xf32>
      %c0_60 = arith.constant 0 : index
      %c0_61 = arith.constant 0 : index
      %c0_62 = arith.constant 0 : index
      %120 = vector.load %arg2[%c0_60, %c0_61, %c0_62] : memref<1x16x16xf32, #tpu.memory_space<vmem>>, vector<1x16x16xf32>
      %121 = vector.shape_cast %120 : vector<1x16x16xf32> to vector<16x16xf32>
      %cst_63 = arith.constant dense<0.000000e+00> : vector<16x16xf32>
      %122 = tpu.matmul %119, %121, %cst_63 {dimension_numbers = #tpu.dot_dimension_numbers<[1], [0], [0], [1], [0, 0, 1, 1], [], []>} : vector<16x16xf32>, vector<16x16xf32>, vector<16x16xf32> -> vector<16x16xf32>
      %c0_64 = arith.constant 0 : index
      %c0_65 = arith.constant 0 : index
      %123 = vector.load %arg10[%c0_64, %c0_65] : memref<16x16xf32, #tpu.memory_space<vmem>>, vector<16x16xf32>
      tpu.vector_store %arg10[%c0_64, %c0_65], %122 {strides = array<i32>} : memref<16x16xf32, #tpu.memory_space<vmem>>, vector<16x16xf32>,
    } else {
    }
    %c0 = arith.constant 0 : index
    %c0_2 = arith.constant 0 : index
    %6 = vector.load %arg10[%c0, %c0_2] : memref<16x16xf32, #tpu.memory_space<vmem>>, vector<16x16xf32>
    %c0_3 = arith.constant 0 : index
    %c0_4 = arith.constant 0 : index
    %c0_5 = arith.constant 0 : index
    %7 = vector.load %arg3[%c0_3, %c0_4, %c0_5] : memref<1x16x64xf32, #tpu.memory_space<vmem>>, vector<1x16x64xf32>
    %8 = vector.shape_cast %7 : vector<1x16x64xf32> to vector<16x64xf32>
    %cst = arith.constant dense<0.000000e+00> : vector<16x64xf32>
    %9 = tpu.matmul %6, %8, %cst {dimension_numbers = #tpu.dot_dimension_numbers<[1], [0], [0], [1], [0, 0, 1, 1], [], []>} : vector<16x16xf32>, vector<16x64xf32>, vector<16x64xf32> -> vector<16x64xf32>
    %10 = vector.extract_strided_slice %9 {offsets = [0, 0], sizes = [16, 32], strides = [1, 1]} : vector<16x64xf32> to vector<16x32xf32>
    %11 = vector.extract_strided_slice %9 {offsets = [0, 32], sizes = [16, 32], strides = [1, 1]} : vector<16x64xf32> to vector<16x32xf32>
    %c0_6 = arith.constant 0 : index
    %c0_7 = arith.constant 0 : index
    %c0_8 = arith.constant 0 : index
    %12 = vector.load %arg4[%c0_6, %c0_7, %c0_8] : memref<1x4x32xf32, #tpu.memory_space<vmem>>, vector<1x4x32xf32>
    %13 = vector.shape_cast %12 : vector<1x4x32xf32> to vector<4x32xf32>
    %c0_9 = arith.constant 0 : index
    %c0_10 = arith.constant 0 : index
    %c0_11 = arith.constant 0 : index
    %14 = vector.load %arg7[%c0_9, %c0_10, %c0_11] : memref<1x3x32xf32, #tpu.memory_space<vmem>>, vector<1x3x32xf32>
    %15 = vector.shape_cast %14 : vector<1x3x32xf32> to vector<3x32xf32>
    %16 = vector.extract_strided_slice %15 {offsets = [0, 0], sizes = [1, 32], strides = [1, 1]} : vector<3x32xf32> to vector<1x32xf32>
    %17 = vector.extract_strided_slice %15 {offsets = [1, 0], sizes = [1, 32], strides = [1, 1]} : vector<3x32xf32> to vector<1x32xf32>
    %18 = vector.extract_strided_slice %15 {offsets = [2, 0], sizes = [1, 32], strides = [1, 1]} : vector<3x32xf32> to vector<1x32xf32>
    %19 = vector.extract_strided_slice %13 {offsets = [3, 0], sizes = [1, 32], strides = [1, 1]} : vector<4x32xf32> to vector<1x32xf32>
    %20 = vector.broadcast %19 : vector<1x32xf32> to vector<16x32xf32>
    %21 = arith.mulf %10, %20 : vector<16x32xf32>
    %22 = tpu.iota {dimensions = array<i32: 0>} : vector<16x32xi32>
    %c1_i32_12 = arith.constant 1 : i32
    %23 = tpu.dynamic_rotate %10 by %c1_i32_12 dim 0 : vector<16x32xf32>, i32 -> vector<16x32xf32>
    %c1_i32_13 = arith.constant 1 : i32
    %24 = vector.broadcast %c1_i32_13 : i32 to vector<16x32xi32>
    %25 = arith.cmpi sge, %22, %24 : vector<16x32xi32>
    %cst_14 = arith.constant 0.000000e+00 : f32
    %26 = vector.broadcast %cst_14 : f32 to vector<16x32xf32>
    %27 = arith.select %25, %23, %26 : vector<16x32xi1>, vector<16x32xf32>
    %28 = vector.extract_strided_slice %13 {offsets = [2, 0], sizes = [1, 32], strides = [1, 1]} : vector<4x32xf32> to vector<1x32xf32>
    %29 = vector.broadcast %28 : vector<1x32xf32> to vector<16x32xf32>
    %30 = arith.mulf %27, %29 : vector<16x32xf32>
    %31 = arith.addf %21, %30 : vector<16x32xf32>
    %c2_i32 = arith.constant 2 : i32
    %32 = tpu.dynamic_rotate %10 by %c2_i32 dim 0 : vector<16x32xf32>, i32 -> vector<16x32xf32>
    %c2_i32_15 = arith.constant 2 : i32
    %33 = vector.broadcast %c2_i32_15 : i32 to vector<16x32xi32>
    %34 = arith.cmpi sge, %22, %33 : vector<16x32xi32>
    %cst_16 = arith.constant 0.000000e+00 : f32
    %35 = vector.broadcast %cst_16 : f32 to vector<16x32xf32>
    %36 = arith.select %34, %32, %35 : vector<16x32xi1>, vector<16x32xf32>
    %37 = vector.extract_strided_slice %13 {offsets = [1, 0], sizes = [1, 32], strides = [1, 1]} : vector<4x32xf32> to vector<1x32xf32>
    %38 = vector.broadcast %37 : vector<1x32xf32> to vector<16x32xf32>
    %39 = arith.mulf %36, %38 : vector<16x32xf32>
    %40 = arith.addf %31, %39 : vector<16x32xf32>
    %c3_i32 = arith.constant 3 : i32
    %41 = tpu.dynamic_rotate %10 by %c3_i32 dim 0 : vector<16x32xf32>, i32 -> vector<16x32xf32>
    %c3_i32_17 = arith.constant 3 : i32
    %42 = vector.broadcast %c3_i32_17 : i32 to vector<16x32xi32>
    %43 = arith.cmpi sge, %22, %42 : vector<16x32xi32>
    %cst_18 = arith.constant 0.000000e+00 : f32
    %44 = vector.broadcast %cst_18 : f32 to vector<16x32xf32>
    %45 = arith.select %43, %41, %44 : vector<16x32xi1>, vector<16x32xf32>
    %46 = vector.extract_strided_slice %13 {offsets = [0, 0], sizes = [1, 32], strides = [1, 1]} : vector<4x32xf32> to vector<1x32xf32>
    %47 = vector.broadcast %46 : vector<1x32xf32> to vector<16x32xf32>
    %48 = arith.mulf %45, %47 : vector<16x32xf32>
    %49 = arith.addf %40, %48 : vector<16x32xf32>
    %50 = vector.broadcast %16 : vector<1x32xf32> to vector<16x32xf32>
    %51 = arith.addf %49, %50 : vector<16x32xf32>
    %52 = arith.negf %51 : vector<16x32xf32>
    %53 = math.exp %52 : vector<16x32xf32>
    %cst_19 = arith.constant 1.000000e+00 : f32
    %54 = vector.broadcast %cst_19 : f32 to vector<16x32xf32>
    %55 = arith.addf %54, %53 : vector<16x32xf32>
    %56 = arith.divf %54, %55 : vector<16x32xf32>
    %57 = arith.mulf %51, %56 : vector<16x32xf32>
    %c0_20 = arith.constant 0 : index
    %c0_21 = arith.constant 0 : index
    %c0_22 = arith.constant 0 : index
    %58 = vector.load %arg5[%c0_20, %c0_21, %c0_22] : memref<1x32x48xf32, #tpu.memory_space<vmem>>, vector<1x32x48xf32>
    %59 = vector.shape_cast %58 : vector<1x32x48xf32> to vector<32x48xf32>
    %cst_23 = arith.constant dense<0.000000e+00> : vector<16x48xf32>
    %60 = tpu.matmul %57, %59, %cst_23 {dimension_numbers = #tpu.dot_dimension_numbers<[1], [0], [0], [1], [0, 0, 1, 1], [], []>} : vector<16x32xf32>, vector<32x48xf32>, vector<16x48xf32> -> vector<16x48xf32>
    %61 = vector.extract_strided_slice %60 {offsets = [0, 0], sizes = [16, 32], strides = [1, 1]} : vector<16x48xf32> to vector<16x32xf32>
    %62 = vector.broadcast %17 : vector<1x32xf32> to vector<16x32xf32>
    %63 = arith.addf %61, %62 : vector<16x32xf32>
    %cst_24 = arith.constant 0.000000e+00 : f32
    %64 = vector.broadcast %cst_24 : f32 to vector<16x32xf32>
    %65 = arith.maximumf %63, %64 : vector<16x32xf32>
    %66 = math.absf %63 : vector<16x32xf32>
    %cst_25 = arith.constant 0.000000e+00 : f32
    %67 = vector.broadcast %cst_25 : f32 to vector<16x32xf32>
    %68 = arith.subf %67, %66 : vector<16x32xf32>
    %69 = math.exp %68 : vector<16x32xf32>
    %cst_26 = arith.constant 1.000000e+00 : f32
    %70 = vector.broadcast %cst_26 : f32 to vector<16x32xf32>
    %71 = arith.addf %70, %69 : vector<16x32xf32>
    %72 = math.log %71 : vector<16x32xf32>
    %73 = arith.addf %65, %72 : vector<16x32xf32>
    %c0_27 = arith.constant 0 : index
    %c0_28 = arith.constant 0 : index
    %74 = vector.load %arg11[%c0_27, %c0_28] : memref<16x32xf32, #tpu.memory_space<vmem>>, vector<16x32xf32>
    tpu.vector_store %arg11[%c0_27, %c0_28], %73 {strides = array<i32>} : memref<16x32xf32, #tpu.memory_space<vmem>>, vector<16x32xf32>,
    %75 = arith.mulf %73, %57 : vector<16x32xf32>
    %c0_29 = arith.constant 0 : index
    %c0_30 = arith.constant 0 : index
    %76 = vector.load %arg12[%c0_29, %c0_30] : memref<16x32xf32, #tpu.memory_space<vmem>>, vector<16x32xf32>
    tpu.vector_store %arg12[%c0_29, %c0_30], %75 {strides = array<i32>} : memref<16x32xf32, #tpu.memory_space<vmem>>, vector<16x32xf32>,
    %77 = vector.extract_strided_slice %60 {offsets = [0, 32], sizes = [16, 8], strides = [1, 1]} : vector<16x48xf32> to vector<16x8xf32>
    %c0_31 = arith.constant 0 : index
    %c0_32 = arith.constant 0 : index
    %78 = vector.load %arg13[%c0_31, %c0_32] : memref<16x8xf32, #tpu.memory_space<vmem>>, vector<16x8xf32>
    tpu.vector_store %arg13[%c0_31, %c0_32], %77 {strides = array<i32>} : memref<16x8xf32, #tpu.memory_space<vmem>>, vector<16x8xf32>,
    %79 = vector.extract_strided_slice %60 {offsets = [0, 40], sizes = [16, 8], strides = [1, 1]} : vector<16x48xf32> to vector<16x8xf32>
    %c0_33 = arith.constant 0 : index
    %c0_34 = arith.constant 0 : index
    %80 = vector.load %arg14[%c0_33, %c0_34] : memref<16x8xf32, #tpu.memory_space<vmem>>, vector<16x8xf32>
    tpu.vector_store %arg14[%c0_33, %c0_34], %79 {strides = array<i32>} : memref<16x8xf32, #tpu.memory_space<vmem>>, vector<16x8xf32>,
    %81 = vector.broadcast %18 : vector<1x32xf32> to vector<16x32xf32>
    %82 = arith.mulf %57, %81 : vector<16x32xf32>
    %c0_35 = arith.constant 0 : index
    %c0_36 = arith.constant 0 : index
    %83 = vector.load %arg15[%c0_35, %c0_36] : memref<16x32xf32, #tpu.memory_space<vmem>>, vector<16x32xf32>
    tpu.vector_store %arg15[%c0_35, %c0_36], %82 {strides = array<i32>} : memref<16x32xf32, #tpu.memory_space<vmem>>, vector<16x32xf32>,
    %c0_37 = arith.constant 0 : index
    %c0_38 = arith.constant 0 : index
    %c0_39 = arith.constant 0 : index
    %84 = vector.load %arg6[%c0_37, %c0_38, %c0_39] : memref<1x8x32xf32, #tpu.memory_space<vmem>>, vector<1x8x32xf32>
    %85 = vector.shape_cast %84 : vector<1x8x32xf32> to vector<8x32xf32>
    %86 = tpu.iota {dimensions = array<i32: 0>} : vector<8x8xi32>
    %87 = tpu.iota {dimensions = array<i32: 1>} : vector<8x8xi32>
    %88 = arith.cmpi eq, %86, %87 : vector<8x8xi32>
    %cst_40 = arith.constant 1.000000e+00 : f32
    %cst_41 = arith.constant 0.000000e+00 : f32
    %89 = vector.broadcast %cst_40 : f32 to vector<8x8xf32>
    %90 = vector.broadcast %cst_41 : f32 to vector<8x8xf32>
    %91 = arith.select %88, %89, %90 : vector<8x8xi1>, vector<8x8xf32>
    %cst_42 = arith.constant 0.000000e+00 : f32
    %92 = vector.broadcast %cst_42 : f32 to vector<8x32xf32>
    %c0_i32_43 = arith.constant 0 : i32
    %c2_i32_44 = arith.constant 2 : i32
    %93 = arith.addi %c0_i32_43, %c2_i32_44 : i32
    %c1_i32_45 = arith.constant 1 : i32
    %94 = scf.for %arg16 = %c0_i32_43 to %93 step %c1_i32_45 iter_args(%arg17 = %92) -> (vector<8x32xf32>)  : i32 {
      %c8_i32 = arith.constant 8 : i32
      %112 = arith.muli %arg16, %c8_i32 : i32
      %113 = tpu.assume_multiple %112, 8 : i32
      %114 = arith.index_cast %113 : i32 to index
      %c0_58 = arith.constant 0 : index
      %115 = vector.load %arg11[%114, %c0_58] : memref<16x32xf32, #tpu.memory_space<vmem>>, vector<8x32xf32>
      %116 = arith.index_cast %113 : i32 to index
      %c0_59 = arith.constant 0 : index
      %117 = vector.load %arg12[%116, %c0_59] : memref<16x32xf32, #tpu.memory_space<vmem>>, vector<8x32xf32>
      %118 = arith.index_cast %113 : i32 to index
      %c0_60 = arith.constant 0 : index
      %119 = vector.load %arg13[%118, %c0_60] : memref<16x8xf32, #tpu.memory_space<vmem>>, vector<8x8xf32>
      %cst_61 = arith.constant dense<0.000000e+00> : vector<8x8xf32>
      %120 = tpu.matmul %91, %119, %cst_61 {dimension_numbers = #tpu.dot_dimension_numbers<[1], [1], [0], [0], [0, 0, 1, 0], [], []>} : vector<8x8xf32>, vector<8x8xf32>, vector<8x8xf32> -> vector<8x8xf32>
      %121 = arith.index_cast %113 : i32 to index
      %c0_62 = arith.constant 0 : index
      %122 = vector.load %arg14[%121, %c0_62] : memref<16x8xf32, #tpu.memory_space<vmem>>, vector<8x8xf32>
      %cst_63 = arith.constant dense<0.000000e+00> : vector<8x8xf32>
      %123 = tpu.matmul %91, %122, %cst_63 {dimension_numbers = #tpu.dot_dimension_numbers<[1], [1], [0], [0], [0, 0, 1, 0], [], []>} : vector<8x8xf32>, vector<8x8xf32>, vector<8x8xf32> -> vector<8x8xf32>
      %124 = vector.extract_strided_slice %115 {offsets = [0, 0], sizes = [1, 32], strides = [1, 1]} : vector<8x32xf32> to vector<1x32xf32>
      %125 = vector.broadcast %124 : vector<1x32xf32> to vector<8x32xf32>
      %126 = arith.mulf %125, %85 : vector<8x32xf32>
      %127 = math.exp %126 : vector<8x32xf32>
      %128 = arith.mulf %127, %arg17 : vector<8x32xf32>
      %129 = vector.extract_strided_slice %120 {offsets = [0, 0], sizes = [8, 1], strides = [1, 1]} : vector<8x8xf32> to vector<8x1xf32>
      %130 = vector.extract_strided_slice %117 {offsets = [0, 0], sizes = [1, 32], strides = [1, 1]} : vector<8x32xf32> to vector<1x32xf32>
      %131 = vector.broadcast %129 : vector<8x1xf32> to vector<8x32xf32>
      %132 = vector.broadcast %130 : vector<1x32xf32> to vector<8x32xf32>
      %133 = arith.mulf %131, %132 : vector<8x32xf32>
      %134 = arith.addf %128, %133 : vector<8x32xf32>
      %135 = vector.extract_strided_slice %123 {offsets = [0, 0], sizes = [8, 1], strides = [1, 1]} : vector<8x8xf32> to vector<8x1xf32>
      %136 = vector.broadcast %135 : vector<8x1xf32> to vector<8x32xf32>
      %137 = arith.mulf %136, %134 : vector<8x32xf32>
      %cst_64 = arith.constant dense<0.000000e+00> : vector<32xf32>
      %138 = vector.multi_reduction <add>, %137, %cst_64 [0] : vector<8x32xf32> to vector<32xf32>
      %139 = vector.shape_cast %138 : vector<32xf32> to vector<1x32xf32>
      %140 = vector.extract_strided_slice %115 {offsets = [1, 0], sizes = [1, 32], strides = [1, 1]} : vector<8x32xf32> to vector<1x32xf32>
      %141 = vector.broadcast %140 : vector<1x32xf32> to vector<8x32xf32>
      %142 = arith.mulf %141, %85 : vector<8x32xf32>
      %143 = math.exp %142 : vector<8x32xf32>
      %144 = arith.mulf %143, %134 : vector<8x32xf32>
      %145 = vector.extract_strided_slice %120 {offsets = [0, 1], sizes = [8, 1], strides = [1, 1]} : vector<8x8xf32> to vector<8x1xf32>
      %146 = vector.extract_strided_slice %117 {offsets = [1, 0], sizes = [1, 32], strides = [1, 1]} : vector<8x32xf32> to vector<1x32xf32>
      %147 = vector.broadcast %145 : vector<8x1xf32> to vector<8x32xf32>
      %148 = vector.broadcast %146 : vector<1x32xf32> to vector<8x32xf32>
      %149 = arith.mulf %147, %148 : vector<8x32xf32>
      %150 = arith.addf %144, %149 : vector<8x32xf32>
      %151 = vector.extract_strided_slice %123 {offsets = [0, 1], sizes = [8, 1], strides = [1, 1]} : vector<8x8xf32> to vector<8x1xf32>
      %152 = vector.broadcast %151 : vector<8x1xf32> to vector<8x32xf32>
      %153 = arith.mulf %152, %150 : vector<8x32xf32>
      %cst_65 = arith.constant dense<0.000000e+00> : vector<32xf32>
      %154 = vector.multi_reduction <add>, %153, %cst_65 [0] : vector<8x32xf32> to vector<32xf32>
      %155 = vector.shape_cast %154 : vector<32xf32> to vector<1x32xf32>
      %156 = vector.extract_strided_slice %115 {offsets = [2, 0], sizes = [1, 32], strides = [1, 1]} : vector<8x32xf32> to vector<1x32xf32>
      %157 = vector.broadcast %156 : vector<1x32xf32> to vector<8x32xf32>
      %158 = arith.mulf %157, %85 : vector<8x32xf32>
      %159 = math.exp %158 : vector<8x32xf32>
      %160 = arith.mulf %159, %150 : vector<8x32xf32>
      %161 = vector.extract_strided_slice %120 {offsets = [0, 2], sizes = [8, 1], strides = [1, 1]} : vector<8x8xf32> to vector<8x1xf32>
      %162 = vector.extract_strided_slice %117 {offsets = [2, 0], sizes = [1, 32], strides = [1, 1]} : vector<8x32xf32> to vector<1x32xf32>
      %163 = vector.broadcast %161 : vector<8x1xf32> to vector<8x32xf32>
      %164 = vector.broadcast %162 : vector<1x32xf32> to vector<8x32xf32>
      %165 = arith.mulf %163, %164 : vector<8x32xf32>
      %166 = arith.addf %160, %165 : vector<8x32xf32>
      %167 = vector.extract_strided_slice %123 {offsets = [0, 2], sizes = [8, 1], strides = [1, 1]} : vector<8x8xf32> to vector<8x1xf32>
      %168 = vector.broadcast %167 : vector<8x1xf32> to vector<8x32xf32>
      %169 = arith.mulf %168, %166 : vector<8x32xf32>
      %cst_66 = arith.constant dense<0.000000e+00> : vector<32xf32>
      %170 = vector.multi_reduction <add>, %169, %cst_66 [0] : vector<8x32xf32> to vector<32xf32>
      %171 = vector.shape_cast %170 : vector<32xf32> to vector<1x32xf32>
      %172 = vector.extract_strided_slice %115 {offsets = [3, 0], sizes = [1, 32], strides = [1, 1]} : vector<8x32xf32> to vector<1x32xf32>
      %173 = vector.broadcast %172 : vector<1x32xf32> to vector<8x32xf32>
      %174 = arith.mulf %173, %85 : vector<8x32xf32>
      %175 = math.exp %174 : vector<8x32xf32>
      %176 = arith.mulf %175, %166 : vector<8x32xf32>
      %177 = vector.extract_strided_slice %120 {offsets = [0, 3], sizes = [8, 1], strides = [1, 1]} : vector<8x8xf32> to vector<8x1xf32>
      %178 = vector.extract_strided_slice %117 {offsets = [3, 0], sizes = [1, 32], strides = [1, 1]} : vector<8x32xf32> to vector<1x32xf32>
      %179 = vector.broadcast %177 : vector<8x1xf32> to vector<8x32xf32>
      %180 = vector.broadcast %178 : vector<1x32xf32> to vector<8x32xf32>
      %181 = arith.mulf %179, %180 : vector<8x32xf32>
      %182 = arith.addf %176, %181 : vector<8x32xf32>
      %183 = vector.extract_strided_slice %123 {offsets = [0, 3], sizes = [8, 1], strides = [1, 1]} : vector<8x8xf32> to vector<8x1xf32>
      %184 = vector.broadcast %183 : vector<8x1xf32> to vector<8x32xf32>
      %185 = arith.mulf %184, %182 : vector<8x32xf32>
      %cst_67 = arith.constant dense<0.000000e+00> : vector<32xf32>
      %186 = vector.multi_reduction <add>, %185, %cst_67 [0] : vector<8x32xf32> to vector<32xf32>
      %187 = vector.shape_cast %186 : vector<32xf32> to vector<1x32xf32>
      %188 = vector.extract_strided_slice %115 {offsets = [4, 0], sizes = [1, 32], strides = [1, 1]} : vector<8x32xf32> to vector<1x32xf32>
      %189 = vector.broadcast %188 : vector<1x32xf32> to vector<8x32xf32>
      %190 = arith.mulf %189, %85 : vector<8x32xf32>
      %191 = math.exp %190 : vector<8x32xf32>
      %192 = arith.mulf %191, %182 : vector<8x32xf32>
      %193 = vector.extract_strided_slice %120 {offsets = [0, 4], sizes = [8, 1], strides = [1, 1]} : vector<8x8xf32> to vector<8x1xf32>
      %194 = vector.extract_strided_slice %117 {offsets = [4, 0], sizes = [1, 32], strides = [1, 1]} : vector<8x32xf32> to vector<1x32xf32>
      %195 = vector.broadcast %193 : vector<8x1xf32> to vector<8x32xf32>
      %196 = vector.broadcast %194 : vector<1x32xf32> to vector<8x32xf32>
      %197 = arith.mulf %195, %196 : vector<8x32xf32>
      %198 = arith.addf %192, %197 : vector<8x32xf32>
      %199 = vector.extract_strided_slice %123 {offsets = [0, 4], sizes = [8, 1], strides = [1, 1]} : vector<8x8xf32> to vector<8x1xf32>
      %200 = vector.broadcast %199 : vector<8x1xf32> to vector<8x32xf32>
      %201 = arith.mulf %200, %198 : vector<8x32xf32>
      %cst_68 = arith.constant dense<0.000000e+00> : vector<32xf32>
      %202 = vector.multi_reduction <add>, %201, %cst_68 [0] : vector<8x32xf32> to vector<32xf32>
      %203 = vector.shape_cast %202 : vector<32xf32> to vector<1x32xf32>
      %204 = vector.extract_strided_slice %115 {offsets = [5, 0], sizes = [1, 32], strides = [1, 1]} : vector<8x32xf32> to vector<1x32xf32>
      %205 = vector.broadcast %204 : vector<1x32xf32> to vector<8x32xf32>
      %206 = arith.mulf %205, %85 : vector<8x32xf32>
      %207 = math.exp %206 : vector<8x32xf32>
      %208 = arith.mulf %207, %198 : vector<8x32xf32>
      %209 = vector.extract_strided_slice %120 {offsets = [0, 5], sizes = [8, 1], strides = [1, 1]} : vector<8x8xf32> to vector<8x1xf32>
      %210 = vector.extract_strided_slice %117 {offsets = [5, 0], sizes = [1, 32], strides = [1, 1]} : vector<8x32xf32> to vector<1x32xf32>
      %211 = vector.broadcast %209 : vector<8x1xf32> to vector<8x32xf32>
      %212 = vector.broadcast %210 : vector<1x32xf32> to vector<8x32xf32>
      %213 = arith.mulf %211, %212 : vector<8x32xf32>
      %214 = arith.addf %208, %213 : vector<8x32xf32>
      %215 = vector.extract_strided_slice %123 {offsets = [0, 5], sizes = [8, 1], strides = [1, 1]} : vector<8x8xf32> to vector<8x1xf32>
      %216 = vector.broadcast %215 : vector<8x1xf32> to vector<8x32xf32>
      %217 = arith.mulf %216, %214 : vector<8x32xf32>
      %cst_69 = arith.constant dense<0.000000e+00> : vector<32xf32>
      %218 = vector.multi_reduction <add>, %217, %cst_69 [0] : vector<8x32xf32> to vector<32xf32>
      %219 = vector.shape_cast %218 : vector<32xf32> to vector<1x32xf32>
      %220 = vector.extract_strided_slice %115 {offsets = [6, 0], sizes = [1, 32], strides = [1, 1]} : vector<8x32xf32> to vector<1x32xf32>
      %221 = vector.broadcast %220 : vector<1x32xf32> to vector<8x32xf32>
      %222 = arith.mulf %221, %85 : vector<8x32xf32>
      %223 = math.exp %222 : vector<8x32xf32>
      %224 = arith.mulf %223, %214 : vector<8x32xf32>
      %225 = vector.extract_strided_slice %120 {offsets = [0, 6], sizes = [8, 1], strides = [1, 1]} : vector<8x8xf32> to vector<8x1xf32>
      %226 = vector.extract_strided_slice %117 {offsets = [6, 0], sizes = [1, 32], strides = [1, 1]} : vector<8x32xf32> to vector<1x32xf32>
      %227 = vector.broadcast %225 : vector<8x1xf32> to vector<8x32xf32>
      %228 = vector.broadcast %226 : vector<1x32xf32> to vector<8x32xf32>
      %229 = arith.mulf %227, %228 : vector<8x32xf32>
      %230 = arith.addf %224, %229 : vector<8x32xf32>
      %231 = vector.extract_strided_slice %123 {offsets = [0, 6], sizes = [8, 1], strides = [1, 1]} : vector<8x8xf32> to vector<8x1xf32>
      %232 = vector.broadcast %231 : vector<8x1xf32> to vector<8x32xf32>
      %233 = arith.mulf %232, %230 : vector<8x32xf32>
      %cst_70 = arith.constant dense<0.000000e+00> : vector<32xf32>
      %234 = vector.multi_reduction <add>, %233, %cst_70 [0] : vector<8x32xf32> to vector<32xf32>
      %235 = vector.shape_cast %234 : vector<32xf32> to vector<1x32xf32>
      %236 = vector.extract_strided_slice %115 {offsets = [7, 0], sizes = [1, 32], strides = [1, 1]} : vector<8x32xf32> to vector<1x32xf32>
      %237 = vector.broadcast %236 : vector<1x32xf32> to vector<8x32xf32>
      %238 = arith.mulf %237, %85 : vector<8x32xf32>
      %239 = math.exp %238 : vector<8x32xf32>
      %240 = arith.mulf %239, %230 : vector<8x32xf32>
      %241 = vector.extract_strided_slice %120 {offsets = [0, 7], sizes = [8, 1], strides = [1, 1]} : vector<8x8xf32> to vector<8x1xf32>
      %242 = vector.extract_strided_slice %117 {offsets = [7, 0], sizes = [1, 32], strides = [1, 1]} : vector<8x32xf32> to vector<1x32xf32>
      %243 = vector.broadcast %241 : vector<8x1xf32> to vector<8x32xf32>
      %244 = vector.broadcast %242 : vector<1x32xf32> to vector<8x32xf32>
      %245 = arith.mulf %243, %244 : vector<8x32xf32>
      %246 = arith.addf %240, %245 : vector<8x32xf32>
      %247 = vector.extract_strided_slice %123 {offsets = [0, 7], sizes = [8, 1], strides = [1, 1]} : vector<8x8xf32> to vector<8x1xf32>
      %248 = vector.broadcast %247 : vector<8x1xf32> to vector<8x32xf32>
      %249 = arith.mulf %248, %246 : vector<8x32xf32>
      %cst_71 = arith.constant dense<0.000000e+00> : vector<32xf32>
      %250 = vector.multi_reduction <add>, %249, %cst_71 [0] : vector<8x32xf32> to vector<32xf32>
      %251 = vector.shape_cast %250 : vector<32xf32> to vector<1x32xf32>
      %252 = arith.index_cast %113 : i32 to index
      %c0_72 = arith.constant 0 : index
      %253 = vector.load %arg15[%252, %c0_72] : memref<16x32xf32, #tpu.memory_space<vmem>>, vector<8x32xf32>
      %254 = tpu.concatenate %139, %155, %171, %187, %203, %219, %235, %251 in 0 : vector<1x32xf32>, vector<1x32xf32>, vector<1x32xf32>, vector<1x32xf32>, vector<1x32xf32>, vector<1x32xf32>, vector<1x32xf32>, vector<1x32xf32> -> vector<8x32xf32>
      %255 = arith.addf %253, %254 : vector<8x32xf32>
      %256 = arith.index_cast %113 : i32 to index
      %c0_73 = arith.constant 0 : index
      %257 = vector.load %arg15[%256, %c0_73] : memref<16x32xf32, #tpu.memory_space<vmem>>, vector<8x32xf32>
      tpu.vector_store %arg15[%256, %c0_73], %255 {strides = array<i32>} : memref<16x32xf32, #tpu.memory_space<vmem>>, vector<8x32xf32>,
      scf.yield %246 : vector<8x32xf32>
    }
    %c2_i32_46 = arith.constant 2 : i32
    %c0_47 = arith.constant 0 : index
    %c0_48 = arith.constant 0 : index
    %95 = vector.load %arg15[%c0_47, %c0_48] : memref<16x32xf32, #tpu.memory_space<vmem>>, vector<16x32xf32>
    %96 = arith.negf %11 : vector<16x32xf32>
    %97 = math.exp %96 : vector<16x32xf32>
    %cst_49 = arith.constant 1.000000e+00 : f32
    %98 = vector.broadcast %cst_49 : f32 to vector<16x32xf32>
    %99 = arith.addf %98, %97 : vector<16x32xf32>
    %100 = arith.divf %98, %99 : vector<16x32xf32>
    %101 = arith.mulf %11, %100 : vector<16x32xf32>
    %102 = arith.mulf %95, %101 : vector<16x32xf32>
    %c0_50 = arith.constant 0 : index
    %c0_51 = arith.constant 0 : index
    %c0_52 = arith.constant 0 : index
    %103 = vector.load %arg8[%c0_50, %c0_51, %c0_52] : memref<1x32x16xf32, #tpu.memory_space<vmem>>, vector<1x32x16xf32>
    %104 = vector.shape_cast %103 : vector<1x32x16xf32> to vector<32x16xf32>
    %cst_53 = arith.constant dense<0.000000e+00> : vector<16x16xf32>
    %105 = tpu.matmul %102, %104, %cst_53 {dimension_numbers = #tpu.dot_dimension_numbers<[1], [0], [0], [1], [0, 0, 1, 1], [], []>} : vector<16x32xf32>, vector<32x16xf32>, vector<16x16xf32> -> vector<16x16xf32>
    %c0_i32_54 = arith.constant 0 : i32
    %106 = arith.cmpi eq, %arg0, %c0_i32_54 : i32
    %107 = arith.extui %106 : i1 to i32
    %c0_i32_55 = arith.constant 0 : i32
    %108 = arith.cmpi ne, %107, %c0_i32_55 : i32
    scf.if %108 {
      %c0_58 = arith.constant 0 : index
      %c0_59 = arith.constant 0 : index
      %c0_60 = arith.constant 0 : index
      %c0_61 = arith.constant 0 : index
      %112 = vector.load %arg9[%c0_58, %c0_59, %c0_60, %c0_61] : memref<1x1x16x16xf32, #tpu.memory_space<vmem>>, vector<1x1x16x16xf32>
      %113 = vector.shape_cast %112 : vector<1x1x16x16xf32> to vector<16x16xf32>
      %114 = vector.shape_cast %105 : vector<16x16xf32> to vector<1x1x16x16xf32>
      tpu.vector_store %arg9[%c0_58, %c0_59, %c0_60, %c0_61], %114 {strides = array<i32>} : memref<1x1x16x16xf32, #tpu.memory_space<vmem>>, vector<1x1x16x16xf32>,
    } else {
    }
    %c1_i32_56 = arith.constant 1 : i32
    %109 = arith.cmpi eq, %arg0, %c1_i32_56 : i32
    %110 = arith.extui %109 : i1 to i32
    %c0_i32_57 = arith.constant 0 : i32
    %111 = arith.cmpi ne, %110, %c0_i32_57 : i32
    scf.if %111 {
      %112 = tpu.iota {dimensions = array<i32: 0>} : vector<16x16xi32>
      %113 = tpu.iota {dimensions = array<i32: 1>} : vector<16x16xi32>
      %114 = arith.addi %112, %113 : vector<16x16xi32>
      %c15_i32 = arith.constant 15 : i32
      %115 = vector.broadcast %c15_i32 : i32 to vector<16x16xi32>
      %116 = arith.cmpi eq, %114, %115 : vector<16x16xi32>
      %cst_58 = arith.constant 1.000000e+00 : f32
      %cst_59 = arith.constant 0.000000e+00 : f32
      %117 = vector.broadcast %cst_58 : f32 to vector<16x16xf32>
      %118 = vector.broadcast %cst_59 : f32 to vector<16x16xf32>
      %119 = arith.select %116, %117, %118 : vector<16x16xi1>, vector<16x16xf32>
      %cst_60 = arith.constant dense<0.000000e+00> : vector<16x16xf32>
      %120 = tpu.matmul %119, %105, %cst_60 {dimension_numbers = #tpu.dot_dimension_numbers<[1], [0], [0], [1], [0, 0, 1, 1], [], []>} : vector<16x16xf32>, vector<16x16xf32>, vector<16x16xf32> -> vector<16x16xf32>
      %c0_61 = arith.constant 0 : index
      %c0_62 = arith.constant 0 : index
      %c0_63 = arith.constant 0 : index
      %c0_64 = arith.constant 0 : index
      %121 = vector.load %arg9[%c0_61, %c0_62, %c0_63, %c0_64] : memref<1x1x16x16xf32, #tpu.memory_space<vmem>>, vector<1x1x16x16xf32>
      %122 = vector.shape_cast %121 : vector<1x1x16x16xf32> to vector<16x16xf32>
      %123 = vector.shape_cast %120 : vector<16x16xf32> to vector<1x1x16x16xf32>
      tpu.vector_store %arg9[%c0_61, %c0_62, %c0_63, %c0_64], %123 {strides = array<i32>} : memref<1x1x16x16xf32, #tpu.memory_space<vmem>>, vector<1x1x16x16xf32>,
    } else {
    }
    return
  }
  func.func @transform_0(%arg0: i32, %arg1: i32) -> (i32, i32, i32) {
    %c0_i32 = arith.constant 0 : i32
    %c0_i32_0 = arith.constant 0 : i32
    %c0_i32_1 = arith.constant 0 : i32
    return %arg1, %c0_i32, %c0_i32_0 : i32, i32, i32
  }
  func.func @transform_1(%arg0: i32, %arg1: i32) -> (i32, i32, i32) {
    %c0_i32 = arith.constant 0 : i32
    %c0_i32_0 = arith.constant 0 : i32
    %c0_i32_1 = arith.constant 0 : i32
    return %arg0, %c0_i32, %c0_i32_0 : i32, i32, i32
  }
  func.func @transform_2(%arg0: i32, %arg1: i32) -> (i32, i32, i32) {
    %c0_i32 = arith.constant 0 : i32
    %c0_i32_0 = arith.constant 0 : i32
    %c0_i32_1 = arith.constant 0 : i32
    return %arg0, %c0_i32, %c0_i32_0 : i32, i32, i32
  }
  func.func @transform_3(%arg0: i32, %arg1: i32) -> (i32, i32, i32) {
    %c0_i32 = arith.constant 0 : i32
    %c0_i32_0 = arith.constant 0 : i32
    %c0_i32_1 = arith.constant 0 : i32
    return %arg0, %c0_i32, %c0_i32_0 : i32, i32, i32
  }
  func.func @transform_4(%arg0: i32, %arg1: i32) -> (i32, i32, i32) {
    %c0_i32 = arith.constant 0 : i32
    %c0_i32_0 = arith.constant 0 : i32
    %c0_i32_1 = arith.constant 0 : i32
    return %arg0, %c0_i32, %c0_i32_0 : i32, i32, i32
  }
  func.func @transform_5(%arg0: i32, %arg1: i32) -> (i32, i32, i32) {
    %c0_i32 = arith.constant 0 : i32
    %c0_i32_0 = arith.constant 0 : i32
    %c0_i32_1 = arith.constant 0 : i32
    return %arg0, %c0_i32, %c0_i32_0 : i32, i32, i32
  }
  func.func @transform_6(%arg0: i32, %arg1: i32) -> (i32, i32, i32) {
    %c0_i32 = arith.constant 0 : i32
    %c0_i32_0 = arith.constant 0 : i32
    %c0_i32_1 = arith.constant 0 : i32
    return %arg0, %c0_i32, %c0_i32_0 : i32, i32, i32
  }
  func.func @transform_7(%arg0: i32, %arg1: i32) -> (i32, i32, i32, i32) {
    %c0_i32 = arith.constant 0 : i32
    %c0_i32_0 = arith.constant 0 : i32
    %c0_i32_1 = arith.constant 0 : i32
    return %arg0, %arg1, %c0_i32, %c0_i32_0 : i32, i32, i32, i32
  }
}

</mosaic_0001>

<llo_original>
// kernel: bimamba_forward.1
$region0: #{bimamba_forward.1}
  #allocation0 [shape = 'u32[]', space=smem, size = 0x4, offset = 0x4, fixed_abs, tag = 'smem constant byte address 0x4 - core index']
  #allocation1 [shape = 'u32[144,128]{1,0:T(1,128)}', space=vmem, size = 0x12000, scoped, tag = 'internal scratch']
  #allocation2 [shape = 'f32[16,16]{1,0:T(8,128)}', space=vmem, size = 0x2000, scoped, tag = 'scratch operand']
  #allocation3 [shape = 'f32[16,32]{1,0:T(8,128)}', space=vmem, size = 0x2000, scoped, tag = 'scratch operand']
  #allocation4 [shape = 'f32[16,32]{1,0:T(8,128)}', space=vmem, size = 0x2000, scoped, tag = 'scratch operand']
  #allocation5 [shape = 'f32[16,8]{1,0:T(8,128)}', space=vmem, size = 0x2000, scoped, tag = 'scratch operand']
  #allocation6 [shape = 'f32[16,8]{1,0:T(8,128)}', space=vmem, size = 0x2000, scoped, tag = 'scratch operand']
  #allocation7 [shape = 'f32[16,32]{1,0:T(8,128)}', space=vmem, size = 0x2000, scoped, tag = 'scratch operand']
  %s0 = inlined_call_operand.vmem [shape: f32[2,16,16], index: 0, kind: input, shape index: {}]
  %s1 = inlined_call_operand.vmem [shape: f32[2,16,64], index: 1, kind: input, shape index: {}]
  %s2 = inlined_call_operand.vmem [shape: f32[2,4,32], index: 2, kind: input, shape index: {}]
  %s3 = inlined_call_operand.vmem [shape: f32[2,32,48], index: 3, kind: input, shape index: {}]
  %s4 = inlined_call_operand.vmem [shape: f32[2,8,32], index: 4, kind: input, shape index: {}]
  %s5 = inlined_call_operand.vmem [shape: f32[2,3,32], index: 5, kind: input, shape index: {}]
  %s6 = inlined_call_operand.vmem [shape: f32[2,32,16], index: 6, kind: input, shape index: {}]
  %s7 = inlined_call_operand.vmem [shape: f32[2,2,16,16], index: 7, kind: output, shape index: {}]
  %s8 = sld [smem:[#allocation0]]
  $region84: #{bimamba_forward.1} parent=0
    _
  %s10 = ssub.s32 1, %s8
  %s11 = scalar_select 0, %s10, %s8
  loop: start=0, step=1, limit=6
  $region2: #{bimamba_forward.1} parent=0 // loop_pre_header
    _
  $region3: #{bimamba_forward.1} parent=0 // loop_header
    %s13 = sphi 0, %s17
    %p14 = scmp.ge.s32.totalorder %s13, 6
    %s20 = sphi 0, %s32
    %s21 = sphi 0, %s28
    %s22 = sphi 0, %s20
    %s23 = sphi 0, %s21
    %s24 = sphi 0, %s22
    %s25 = sphi 0, %s23
    %s35 = sphi 0, %s37
    %s38 = sphi 0, %s35
    %s39 = sphi 0, %s38
    %s55 = sphi 0, %s39
    %s61 = sphi 0, %s63
    %s64 = sphi 0, %s61
    %s65 = sphi 0, %s64
    %s81 = sphi 0, %s65
    %s87 = sphi 0, %s89
    %s90 = sphi 0, %s87
    %s91 = sphi 0, %s90
    %s107 = sphi 0, %s91
    %s113 = sphi 0, %s115
    %s116 = sphi 0, %s113
    %s117 = sphi 0, %s116
    %s133 = sphi 0, %s117
    %s139 = sphi 0, %s141
    %s142 = sphi 0, %s139
    %s143 = sphi 0, %s142
    %s159 = sphi 0, %s143
    %s165 = sphi 0, %s167
    %s168 = sphi 0, %s165
    %s169 = sphi 0, %s168
    %s185 = sphi 0, %s169
    %s191 = sphi 0, %s193
    %s194 = sphi 0, %s191
    %s195 = sphi 0, %s194
    %s211 = sphi 0, %s195
    %s219 = sphi 0, %s221
    %s222 = sphi 0, %s219
    %s223 = sphi 0, %s222
    %s239 = sphi 0, %s223
  $region4: #{bimamba_forward.1} parent=0 // loop_header_branch
    %16 = sbr.rel (%p14) target = $region8
  $region5: #{bimamba_forward.1} parent=0 // loop_body
    %s18 = ssub.s32 %s13, 1
    %s19 = ssub.s32 %s13, 2
    %s26 = sadd.s32 1, %s21
    %p27 = scmp.ge.s32.totalorder %s26, 2
    %s28 = scalar_select %p27, 0, %s26
    %s29 = sadd.s32 1, %s20
    %s30 = scalar_select %p27, %s29, %s20
    %p31 = scmp.ge.s32.totalorder %s30, 2
    %s32 = scalar_select %p31, 0, %s30
    %s33 = ssub.s32 %s21, %s28
    %p34 = scmp.eq.s32.totalorder %s33, 0
    %s36 = sadd.s32 %s35, 1
    %s37 = scalar_select %p34, %s35, %s36
    %p40 = pneg %p34
    %p41 = scmp.eq.s32.totalorder %s13, 3
    %p42 = por %p40, %p41
    %p43 = scmp.ne.s32.totalorder %s35, %s38
    %p44 = scmp.eq.s32.totalorder %s13, 0
    %p45 = por %p43, %p44
    %p46 = scmp.ne.s32.totalorder %s35, %s38
    %p47 = scmp.eq.s32.totalorder %s18, 3
    %p48 = por %p46, %p47
    %p49 = scmp.ne.s32.totalorder %s38, %s39
    %p50 = scmp.eq.s32.totalorder %s18, 0
    %p51 = por %p49, %p50
    %p52 = scmp.ne.s32.totalorder %s38, %s39
    %p53 = scmp.eq.s32.totalorder %s19, 3
    %p54 = por %p52, %p53
    %p56 = scmp.ne.s32.totalorder %s39, %s55
    %p57 = scmp.eq.s32.totalorder %s19, 0
    %p58 = por %p56, %p57
    %s59 = ssub.s32 %s20, %s32
    %p60 = scmp.eq.s32.totalorder %s59, 0
    %s62 = sadd.s32 %s61, 1
    %s63 = scalar_select %p60, %s61, %s62
    %p66 = pneg %p60
    %p67 = scmp.eq.s32.totalorder %s13, 3
    %p68 = por %p66, %p67
    %p69 = scmp.ne.s32.totalorder %s61, %s64
    %p70 = scmp.eq.s32.totalorder %s13, 0
    %p71 = por %p69, %p70
    %p72 = scmp.ne.s32.totalorder %s61, %s64
    %p73 = scmp.eq.s32.totalorder %s18, 3
    %p74 = por %p72, %p73
    %p75 = scmp.ne.s32.totalorder %s64, %s65
    %p76 = scmp.eq.s32.totalorder %s18, 0
    %p77 = por %p75, %p76
    %p78 = scmp.ne.s32.totalorder %s64, %s65
    %p79 = scmp.eq.s32.totalorder %s19, 3
    %p80 = por %p78, %p79
    %p82 = scmp.ne.s32.totalorder %s65, %s81
    %p83 = scmp.eq.s32.totalorder %s19, 0
    %p84 = por %p82, %p83
    %s85 = ssub.s32 %s20, %s32
    %p86 = scmp.eq.s32.totalorder %s85, 0
    %s88 = sadd.s32 %s87, 1
    %s89 = scalar_select %p86, %s87, %s88
    %p92 = pneg %p86
    %p93 = scmp.eq.s32.totalorder %s13, 3
    %p94 = por %p92, %p93
    %p95 = scmp.ne.s32.totalorder %s87, %s90
    %p96 = scmp.eq.s32.totalorder %s13, 0
    %p97 = por %p95, %p96
    %p98 = scmp.ne.s32.totalorder %s87, %s90
    %p99 = scmp.eq.s32.totalorder %s18, 3
    %p100 = por %p98, %p99
    %p101 = scmp.ne.s32.totalorder %s90, %s91
    %p102 = scmp.eq.s32.totalorder %s18, 0
    %p103 = por %p101, %p102
    %p104 = scmp.ne.s32.totalorder %s90, %s91
    %p105 = scmp.eq.s32.totalorder %s19, 3
    %p106 = por %p104, %p105
    %p108 = scmp.ne.s32.totalorder %s91, %s107
    %p109 = scmp.eq.s32.totalorder %s19, 0
    %p110 = por %p108, %p109
    %s111 = ssub.s32 %s20, %s32
    %p112 = scmp.eq.s32.totalorder %s111, 0
    %s114 = sadd.s32 %s113, 1
    %s115 = scalar_select %p112, %s113, %s114
    %p118 = pneg %p112
    %p119 = scmp.eq.s32.totalorder %s13, 3
    %p120 = por %p118, %p119
    %p121 = scmp.ne.s32.totalorder %s113, %s116
    %p122 = scmp.eq.s32.totalorder %s13, 0
    %p123 = por %p121, %p122
    %p124 = scmp.ne.s32.totalorder %s113, %s116
    %p125 = scmp.eq.s32.totalorder %s18, 3
    %p126 = por %p124, %p125
    %p127 = scmp.ne.s32.totalorder %s116, %s117
    %p128 = scmp.eq.s32.totalorder %s18, 0
    %p129 = por %p127, %p128
    %p130 = scmp.ne.s32.totalorder %s116, %s117
    %p131 = scmp.eq.s32.totalorder %s19, 3
    %p132 = por %p130, %p131
    %p134 = scmp.ne.s32.totalorder %s117, %s133
    %p135 = scmp.eq.s32.totalorder %s19, 0
    %p136 = por %p134, %p135
    %s137 = ssub.s32 %s20, %s32
    %p138 = scmp.eq.s32.totalorder %s137, 0
    %s140 = sadd.s32 %s139, 1
    %s141 = scalar_select %p138, %s139, %s140
    %p144 = pneg %p138
    %p145 = scmp.eq.s32.totalorder %s13, 3
    %p146 = por %p144, %p145
    %p147 = scmp.ne.s32.totalorder %s139, %s142
    %p148 = scmp.eq.s32.totalorder %s13, 0
    %p149 = por %p147, %p148
    %p150 = scmp.ne.s32.totalorder %s139, %s142
    %p151 = scmp.eq.s32.totalorder %s18, 3
    %p152 = por %p150, %p151
    %p153 = scmp.ne.s32.totalorder %s142, %s143
    %p154 = scmp.eq.s32.totalorder %s18, 0
    %p155 = por %p153, %p154
    %p156 = scmp.ne.s32.totalorder %s142, %s143
    %p157 = scmp.eq.s32.totalorder %s19, 3
    %p158 = por %p156, %p157
    %p160 = scmp.ne.s32.totalorder %s143, %s159
    %p161 = scmp.eq.s32.totalorder %s19, 0
    %p162 = por %p160, %p161
    %s163 = ssub.s32 %s20, %s32
    %p164 = scmp.eq.s32.totalorder %s163, 0
    %s166 = sadd.s32 %s165, 1
    %s167 = scalar_select %p164, %s165, %s166
    %p170 = pneg %p164
    %p171 = scmp.eq.s32.totalorder %s13, 3
    %p172 = por %p170, %p171
    %p173 = scmp.ne.s32.totalorder %s165, %s168
    %p174 = scmp.eq.s32.totalorder %s13, 0
    %p175 = por %p173, %p174
    %p176 = scmp.ne.s32.totalorder %s165, %s168
    %p177 = scmp.eq.s32.totalorder %s18, 3
    %p178 = por %p176, %p177
    %p179 = scmp.ne.s32.totalorder %s168, %s169
    %p180 = scmp.eq.s32.totalorder %s18, 0
    %p181 = por %p179, %p180
    %p182 = scmp.ne.s32.totalorder %s168, %s169
    %p183 = scmp.eq.s32.totalorder %s19, 3
    %p184 = por %p182, %p183
    %p186 = scmp.ne.s32.totalorder %s169, %s185
    %p187 = scmp.eq.s32.totalorder %s19, 0
    %p188 = por %p186, %p187
    %s189 = ssub.s32 %s20, %s32
    %p190 = scmp.eq.s32.totalorder %s189, 0
    %s192 = sadd.s32 %s191, 1
    %s193 = scalar_select %p190, %s191, %s192
    %p196 = pneg %p190
    %p197 = scmp.eq.s32.totalorder %s13, 3
    %p198 = por %p196, %p197
    %p199 = scmp.ne.s32.totalorder %s191, %s194
    %p200 = scmp.eq.s32.totalorder %s13, 0
    %p201 = por %p199, %p200
    %p202 = scmp.ne.s32.totalorder %s191, %s194
    %p203 = scmp.eq.s32.totalorder %s18, 3
    %p204 = por %p202, %p203
    %p205 = scmp.ne.s32.totalorder %s194, %s195
    %p206 = scmp.eq.s32.totalorder %s18, 0
    %p207 = por %p205, %p206
    %p208 = scmp.ne.s32.totalorder %s194, %s195
    %p209 = scmp.eq.s32.totalorder %s19, 3
    %p210 = por %p208, %p209
    %p212 = scmp.ne.s32.totalorder %s195, %s211
    %p213 = scmp.eq.s32.totalorder %s19, 0
    %p214 = por %p212, %p213
    %s215 = ssub.s32 %s20, %s32
    %s216 = ssub.s32 %s21, %s28
    %s217 = sor.u32 %s215, %s216
    %p218 = scmp.eq.s32.totalorder %s217, 0
    %s220 = sadd.s32 %s219, 1
    %s221 = scalar_select %p218, %s219, %s220
    %p224 = pneg %p218
    %p225 = scmp.eq.s32.totalorder %s13, 3
    %p226 = por %p224, %p225
    %p227 = scmp.ne.s32.totalorder %s219, %s222
    %p228 = scmp.eq.s32.totalorder %s13, 0
    %p229 = por %p227, %p228
    %p230 = scmp.ne.s32.totalorder %s219, %s222
    %p231 = scmp.eq.s32.totalorder %s18, 3
    %p232 = por %p230, %p231
    %p233 = scmp.ne.s32.totalorder %s222, %s223
    %p234 = scmp.eq.s32.totalorder %s18, 0
    %p235 = por %p233, %p234
    %p236 = scmp.ne.s32.totalorder %s222, %s223
    %p237 = scmp.eq.s32.totalorder %s19, 3
    %p238 = por %p236, %p237
    %p240 = scmp.ne.s32.totalorder %s223, %s239
    %p241 = scmp.eq.s32.totalorder %s19, 0
    %p242 = por %p240, %p241
    %p243 = scmp.le.s32.totalorder 1, %s13
    %p244 = scmp.lt.s32.totalorder %s13, 5
    %p245 = pnand %p243, %p244
    %p246 = pneg %p245
    // Predicated region
    $region9: #{bimamba_forward.1} parent=5 // pred_check
      _
    $region10: #{bimamba_forward.1} parent=5 // pred_check_branch
      %248 = sbr.rel (%p245) target = $region12
    $region11: #{bimamba_forward.1} parent=5 // pred_region
      %s249 = ssub.s32 %s13, 1
    $region12: #{bimamba_forward.1} parent=5 // pred_fallthru
      _
    %p250 = scmp.lt.s32.totalorder %s13, 4
    // Predicated region
    $region13: #{bimamba_forward.1} parent=5 // pred_check
      %p251 = pneg %p250
    $region14: #{bimamba_forward.1} parent=5 // pred_check_branch
      %253 = sbr.rel (%p251) target = $region16
    $region15: #{bimamba_forward.1} parent=5 // pred_region
      // Predicated region
      $region17: #{bimamba_forward.1} parent=15 // pred_check
        %p254 = pneg %p45
      $region18: #{bimamba_forward.1} parent=15 // pred_check_branch
        %256 = sbr.rel (%p254) target = $region20
      $region19: #{bimamba_forward.1} parent=15 // pred_region
        %p257 = scmp.lt.s32.totalorder %s21, 1
        %s258 = scalar_select %p257, %s21, 1
        %s259 = smul.addr %s258, 2
        %s260 = smul.addr %s259, 8
        %s261 = scalar_lea.vmem %s0, %s260
      $region20: #{bimamba_forward.1} parent=15 // pred_fallthru
        _
      // Predicated region
      $region21: #{bimamba_forward.1} parent=15 // pred_check
        %p262 = pneg %p71
      $region22: #{bimamba_forward.1} parent=15 // pred_check_branch
        %264 = sbr.rel (%p262) target = $region24
      $region23: #{bimamba_forward.1} parent=15 // pred_region
        %p265 = scmp.lt.s32.totalorder %s20, 1
        %s266 = scalar_select %p265, %s20, 1
        %s267 = smul.addr %s266, 2
        %s268 = smul.addr %s267, 8
        %s269 = scalar_lea.vmem %s1, %s268
      $region24: #{bimamba_forward.1} parent=15 // pred_fallthru
        _
      // Predicated region
      $region25: #{bimamba_forward.1} parent=15 // pred_check
        %p270 = pneg %p97
      $region26: #{bimamba_forward.1} parent=15 // pred_check_branch
        %272 = sbr.rel (%p270) target = $region28
      $region27: #{bimamba_forward.1} parent=15 // pred_region
        %p273 = scmp.lt.s32.totalorder %s20, 1
        %s274 = scalar_select %p273, %s20, 1
        %s275 = smul.addr %s274, 4
        %s276 = scalar_lea.vmem %s2, %s275
      $region28: #{bimamba_forward.1} parent=15 // pred_fallthru
        _
      // Predicated region
      $region29: #{bimamba_forward.1} parent=15 // pred_check
        %p277 = pneg %p123
      $region30: #{bimamba_forward.1} parent=15 // pred_check_branch
        %279 = sbr.rel (%p277) target = $region32
      $region31: #{bimamba_forward.1} parent=15 // pred_region
        %p280 = scmp.lt.s32.totalorder %s20, 1
        %s281 = scalar_select %p280, %s20, 1
        %s282 = smul.addr %s281, 4
        %s283 = smul.addr %s282, 8
        %s284 = scalar_lea.vmem %s3, %s283
      $region32: #{bimamba_forward.1} parent=15 // pred_fallthru
        _
      // Predicated region
      $region33: #{bimamba_forward.1} parent=15 // pred_check
        %p285 = pneg %p149
      $region34: #{bimamba_forward.1} parent=15 // pred_check_branch
        %287 = sbr.rel (%p285) target = $region36
      $region35: #{bimamba_forward.1} parent=15 // pred_region
        %p288 = scmp.lt.s32.totalorder %s20, 1
        %s289 = scalar_select %p288, %s20, 1
        %s290 = smul.addr %s289, 8
        %s291 = scalar_lea.vmem %s4, %s290
      $region36: #{bimamba_forward.1} parent=15 // pred_fallthru
        _
      // Predicated region
      $region37: #{bimamba_forward.1} parent=15 // pred_check
        %p292 = pneg %p175
      $region38: #{bimamba_forward.1} parent=15 // pred_check_branch
        %294 = sbr.rel (%p292) target = $region40
      $region39: #{bimamba_forward.1} parent=15 // pred_region
        %p295 = scmp.lt.s32.totalorder %s20, 1
        %s296 = scalar_select %p295, %s20, 1
        %s297 = smul.addr %s296, 4
        %s298 = scalar_lea.vmem %s5, %s297
      $region40: #{bimamba_forward.1} parent=15 // pred_fallthru
        _
      // Predicated region
      $region41: #{bimamba_forward.1} parent=15 // pred_check
        %p299 = pneg %p201
      $region42: #{bimamba_forward.1} parent=15 // pred_check_branch
        %301 = sbr.rel (%p299) target = $region44
      $region43: #{bimamba_forward.1} parent=15 // pred_region
        %p302 = scmp.lt.s32.totalorder %s20, 1
        %s303 = scalar_select %p302, %s20, 1
        %s304 = smul.addr %s303, 4
        %s305 = smul.addr %s304, 8
        %s306 = scalar_lea.vmem %s6, %s305
      $region44: #{bimamba_forward.1} parent=15 // pred_fallthru
        _
    $region16: #{bimamba_forward.1} parent=5 // pred_fallthru
      _
    %p307 = scmp.le.s32.totalorder 1, %s13
    %p308 = scmp.lt.s32.totalorder %s13, 5
    %p309 = pnand %p307, %p308
    %p310 = pneg %p309
    // Predicated region
    $region45: #{bimamba_forward.1} parent=5 // pred_check
      _
    $region46: #{bimamba_forward.1} parent=5 // pred_check_branch
      %312 = sbr.rel (%p309) target = $region48
    $region47: #{bimamba_forward.1} parent=5 // pred_region
      %s313 = ssub.s32 %s13, 1
      %p314 = scmp.lt.s32.totalorder %s23, 1
      %s315 = scalar_select %p314, %s23, 1
      %s316 = smul.addr %s315, 2
      %s317 = smul.addr %s316, 8
      %s318 = scalar_lea.vmem %s0, %s317
      %p319 = pneg %p51
      %p320 = pneg %p48
      %p321 = scmp.lt.s32.totalorder %s22, 1
      %s322 = scalar_select %p321, %s22, 1
      %s323 = smul.addr %s322, 2
      %s324 = smul.addr %s323, 8
      %s325 = scalar_lea.vmem %s1, %s324
      %p326 = pneg %p77
      %p327 = pneg %p74
      %p328 = scmp.lt.s32.totalorder %s22, 1
      %s329 = scalar_select %p328, %s22, 1
      %s330 = smul.addr %s329, 4
      %s331 = scalar_lea.vmem %s2, %s330
      %p332 = pneg %p103
      %p333 = pneg %p100
      %p334 = scmp.lt.s32.totalorder %s22, 1
      %s335 = scalar_select %p334, %s22, 1
      %s336 = smul.addr %s335, 4
      %s337 = smul.addr %s336, 8
      %s338 = scalar_lea.vmem %s3, %s337
      %p339 = pneg %p129
      %p340 = pneg %p126
      %p341 = scmp.lt.s32.totalorder %s22, 1
      %s342 = scalar_select %p341, %s22, 1
      %s343 = smul.addr %s342, 8
      %s344 = scalar_lea.vmem %s4, %s343
      %p345 = pneg %p155
      %p346 = pneg %p152
      %p347 = scmp.lt.s32.totalorder %s22, 1
      %s348 = scalar_select %p347, %s22, 1
      %s349 = smul.addr %s348, 4
      %s350 = scalar_lea.vmem %s5, %s349
      %p351 = pneg %p181
      %p352 = pneg %p178
      %p353 = scmp.lt.s32.totalorder %s22, 1
      %s354 = scalar_select %p353, %s22, 1
      %s355 = smul.addr %s354, 4
      %s356 = smul.addr %s355, 8
      %s357 = scalar_lea.vmem %s6, %s356
      %p358 = pneg %p207
      %p359 = pneg %p204
      %p360 = pneg %p235
      %p361 = pneg %p232
      %p362 = scmp.lt.s32.totalorder %s22, 1
      %s363 = scalar_select %p362, %s22, 1
      %p364 = scmp.lt.s32.totalorder %s23, 1
      %s365 = scalar_select %p364, %s23, 1
      %s366 = smul.addr %s365, 2
      %s367 = smul.addr %s363, 4
      %s368 = sadd.s32 %s366, %s367
      %s369 = smul.addr %s368, 8
      %s370 = scalar_lea.vmem %s7, %s369
      %p371 = scmp.lt.s32.totalorder %s23, 1
      %s372 = scalar_select %p371, %s23, 1
      %s373 = smul.addr %s372, 2
      %s374 = smul.addr %s373, 8
      %s375 = scalar_lea.vmem %s0, %s374
      %p376 = scmp.lt.s32.totalorder %s22, 1
      %s377 = scalar_select %p376, %s22, 1
      %s378 = smul.addr %s377, 2
      %s379 = smul.addr %s378, 8
      %s380 = scalar_lea.vmem %s1, %s379
      %p381 = scmp.lt.s32.totalorder %s22, 1
      %s382 = scalar_select %p381, %s22, 1
      %s383 = smul.addr %s382, 4
      %s384 = scalar_lea.vmem %s2, %s383
      %p385 = scmp.lt.s32.totalorder %s22, 1
      %s386 = scalar_select %p385, %s22, 1
      %s387 = smul.addr %s386, 4
      %s388 = smul.addr %s387, 8
      %s389 = scalar_lea.vmem %s3, %s388
      %p390 = scmp.lt.s32.totalorder %s22, 1
      %s391 = scalar_select %p390, %s22, 1
      %s392 = smul.addr %s391, 8
      %s393 = scalar_lea.vmem %s4, %s392
      %p394 = scmp.lt.s32.totalorder %s22, 1
      %s395 = scalar_select %p394, %s22, 1
      %s396 = smul.addr %s395, 4
      %s397 = scalar_lea.vmem %s5, %s396
      %p398 = scmp.lt.s32.totalorder %s22, 1
      %s399 = scalar_select %p398, %s22, 1
      %s400 = smul.addr %s399, 4
      %s401 = smul.addr %s400, 8
      %s402 = scalar_lea.vmem %s6, %s401
      %p403 = scmp.lt.s32.totalorder %s22, 1
      %s404 = scalar_select %p403, %s22, 1
      %p405 = scmp.lt.s32.totalorder %s23, 1
      %s406 = scalar_select %p405, %s23, 1
      %s407 = smul.addr %s406, 2
      %s408 = smul.addr %s404, 4
      %s409 = sadd.s32 %s407, %s408
      %s410 = smul.addr %s409, 8
      %s411 = scalar_lea.vmem %s7, %s410
      %p412 = scmp.eq.s32.totalorder %s22, 0
      // Predicated region
      $region49: #{bimamba_forward.1} parent=47 // pred_check
        %p413 = pneg %p412
      $region50: #{bimamba_forward.1} parent=47 // pred_check_branch
        %415 = sbr.rel (%p413) target = $region52
      $region51: #{bimamba_forward.1} parent=47 // pred_region
        %v416 = vld [vmem:[%s375] sm:$0xff]
        %v417 = vld [vmem:[%s375 + $0x8] sm:$0xff]
        %vm418 = vcmask 130048
        %419 = vst.msk [vmem:[#allocation2] sm:$0xff] %vm418, %v416
        %420 = vst.msk [vmem:[#allocation2 + $0x8] sm:$0xff] %vm418, %v417
      $region52: #{bimamba_forward.1} parent=47 // pred_fallthru
        _
      %p421 = scmp.eq.s32.totalorder %s22, 1
      // Predicated region
      $region53: #{bimamba_forward.1} parent=47 // pred_check
        %p422 = pneg %p421
      $region54: #{bimamba_forward.1} parent=47 // pred_check_branch
        %424 = sbr.rel (%p422) target = $region56
      $region55: #{bimamba_forward.1} parent=47 // pred_region
        %v425 = vlaneseq
        %v426 = vshrl.u32 %v425, 7
        %v427 = vadd.s32 %v426, 8
        %v428 = vlaneseq
        %v429 = vand.u32 %v428, 127
        %v430 = vadd.s32 %v426, %v429
        %v431 = vadd.s32 %v427, %v429
        %vm432 = vcmp.eq.s32.totalorder %v430, 15
        %vm433 = vcmp.eq.s32.totalorder %v431, 15
        %v434 = vsel %vm432, 1.0, 0.0
        %v435 = vsel %vm433, 1.0, 0.0
        %v436 = vld [vmem:[%s375] sm:$0xff]
        %v437 = vld [vmem:[%s375 + $0x8] sm:$0xff]
        %vm438 = vcmask 130048
        %v440 = vsel %vm438, %v434, 0
        %v443 = vsel %vm438, %v435, 0
        %445 = vmatprep.subr.mxu0 0.0
        %446 = vmatpush1.msra.mxu0 %v436
        %447 = vmatprep.subr.mxu0 0.0
        %448 = vmatpush1.msra.mxu0 %v437
        %449 = vmatprep.subr.mxu0 0.0
        %450 = vmatpush1.msra.mxu0 0.0
        %451 = vmatprep.subr.mxu0 0.0
        %452 = vmatpush1.msra.mxu0 0.0
        %453 = vmatprep.subr.mxu0 0.0
        %454 = vmatpush1.msra.mxu0 0.0
        %455 = vmatprep.subr.mxu0 0.0
        %456 = vmatpush1.msra.mxu0 0.0
        %457 = vmatprep.subr.mxu0 0.0
        %458 = vmatpush1.msra.mxu0 0.0
        %459 = vmatprep.subr.mxu0 0.0
        %460 = vmatpush1.msra.mxu0 0.0
        %461 = vmatprep.subr.mxu0 0.0
        %462 = vmatpush1.msra.mxu0 0.0
        %463 = vmatprep.subr.mxu0 0.0
        %464 = vmatpush1.msra.mxu0 0.0
        %465 = vmatprep.subr.mxu0 0.0
        %466 = vmatpush1.msra.mxu0 0.0
        %467 = vmatprep.subr.mxu0 0.0
        %468 = vmatpush1.msra.mxu0 0.0
        %469 = vmatprep.subr.mxu0 0.0
        %470 = vmatpush1.msra.mxu0 0.0
        %471 = vmatprep.subr.mxu0 0.0
        %472 = vmatpush1.msra.mxu0 0.0
        %473 = vmatprep.subr.mxu0 0.0
        %474 = vmatpush1.msra.mxu0 0.0
        %475 = vmatprep.subr.mxu0 0.0
        %476 = vmatpush1.msra.mxu0 0.0
        %477 = vmatprep.subr.mxu0 0.0
        %478 = vmatpush1.msra.mxu0 0.0
        %479 = vmatprep.subr.mxu0 0.0
        %480 = vmatpush1.msra.mxu0 0.0
        %481 = vmatprep.subr.mxu0 0.0
        %482 = vmatpush1.msra.mxu0 0.0
        %483 = vmatprep.subr.mxu0 0.0
        %484 = vmatpush1.msra.mxu0 0.0
        %485 = vmatprep.subr.mxu0 0.0
        %486 = vmatpush1.msra.mxu0 0.0
        %487 = vmatprep.subr.mxu0 0.0
        %488 = vmatpush1.msra.mxu0 0.0
        %489 = vmatprep.subr.mxu0 0.0
        %490 = vmatpush1.msra.mxu0 0.0
        %491 = vmatprep.subr.mxu0 0.0
        %492 = vmatpush1.msra.mxu0 0.0
        %493 = vmatprep.subr.mxu0 0.0
        %494 = vmatpush1.msra.mxu0 0.0
        %495 = vmatprep.subr.mxu0 0.0
        %496 = vmatpush1.msra.mxu0 0.0
        %497 = vmatprep.subr.mxu0 0.0
        %498 = vmatpush1.msra.mxu0 0.0
        %499 = vmatprep.subr.mxu0 0.0
        %500 = vmatpush1.msra.mxu0 0.0
        %501 = vmatprep.subr.mxu0 0.0
        %502 = vmatpush1.msra.mxu0 0.0
        %503 = vmatprep.subr.mxu0 0.0
        %504 = vmatpush1.msra.mxu0 0.0
        %505 = vmatprep.subr.mxu0 0.0
        %506 = vmatpush1.msra.mxu0 0.0
        %507 = vmatprep.subr.mxu0 0.0
        %508 = vmatpush1.msra.mxu0 0.0
        %509 = vmatprep.mubr.f32.mxu0 0.0
        %510 = vmatmul.mubr.f32.gmra.mrb[0].mxu0 %v440
        %v511 = vpop.f32.mrb[0].mxu0
        %v512 = vadd.f32 0.0, %v511
        %v513 = vpop.f32.mrb[0].mxu0
        %514 = vmatprep.mubr.f32.mxu0 0.0
        %515 = vmatmul.mubr.f32.gmra.mrb[0].mxu0 %v443
        %v516 = vpop.f32.mrb[0].mxu0
        %v517 = vadd.f32 0.0, %v516
        %v518 = vpop.f32.mrb[0].mxu0
        %519 = vdwg.mxu0
        %520 = vst.msk [vmem:[#allocation2] sm:$0xff] %vm438, %v512
        %521 = vst.msk [vmem:[#allocation2 + $0x8] sm:$0xff] %vm438, %v517
      $region56: #{bimamba_forward.1} parent=47 // pred_fallthru
        _
      %v522 = vld [vmem:[#allocation2] sm:$0xff]
      %v523 = vld [vmem:[#allocation2 + $0x8] sm:$0xff]
      %v524 = vld [vmem:[%s380] sm:$0xff]
      %v525 = vld [vmem:[%s380 + $0x8] sm:$0xff]
      %vm526 = vcmask 130048
      %v528 = vsel %vm526, %v522, 0
      %v531 = vsel %vm526, %v523, 0
      %533 = vmatprep.subr.mxu0 0.0
      %534 = vmatpush1.msra.mxu0 %v524
      %535 = vmatprep.subr.mxu0 0.0
      %536 = vmatpush1.msra.mxu0 %v525
      %537 = vmatprep.subr.mxu0 0.0
      %538 = vmatpush1.msra.mxu0 0.0
      %539 = vmatprep.subr.mxu0 0.0
      %540 = vmatpush1.msra.mxu0 0.0
      %541 = vmatprep.subr.mxu0 0.0
      %542 = vmatpush1.msra.mxu0 0.0
      %543 = vmatprep.subr.mxu0 0.0
      %544 = vmatpush1.msra.mxu0 0.0
      %545 = vmatprep.subr.mxu0 0.0
      %546 = vmatpush1.msra.mxu0 0.0
      %547 = vmatprep.subr.mxu0 0.0
      %548 = vmatpush1.msra.mxu0 0.0
      %549 = vmatprep.subr.mxu0 0.0
      %550 = vmatpush1.msra.mxu0 0.0
      %551 = vmatprep.subr.mxu0 0.0
      %552 = vmatpush1.msra.mxu0 0.0
      %553 = vmatprep.subr.mxu0 0.0
      %554 = vmatpush1.msra.mxu0 0.0
      %555 = vmatprep.subr.mxu0 0.0
      %556 = vmatpush1.msra.mxu0 0.0
      %557 = vmatprep.subr.mxu0 0.0
      %558 = vmatpush1.msra.mxu0 0.0
      %559 = vmatprep.subr.mxu0 0.0
      %560 = vmatpush1.msra.mxu0 0.0
      %561 = vmatprep.subr.mxu0 0.0
      %562 = vmatpush1.msra.mxu0 0.0
      %563 = vmatprep.subr.mxu0 0.0
      %564 = vmatpush1.msra.mxu0 0.0
      %565 = vmatprep.subr.mxu0 0.0
      %566 = vmatpush1.msra.mxu0 0.0
      %567 = vmatprep.subr.mxu0 0.0
      %568 = vmatpush1.msra.mxu0 0.0
      %569 = vmatprep.subr.mxu0 0.0
      %570 = vmatpush1.msra.mxu0 0.0
      %571 = vmatprep.subr.mxu0 0.0
      %572 = vmatpush1.msra.mxu0 0.0
      %573 = vmatprep.subr.mxu0 0.0
      %574 = vmatpush1.msra.mxu0 0.0
      %575 = vmatprep.subr.mxu0 0.0
      %576 = vmatpush1.msra.mxu0 0.0
      %577 = vmatprep.subr.mxu0 0.0
      %578 = vmatpush1.msra.mxu0 0.0
      %579 = vmatprep.subr.mxu0 0.0
      %580 = vmatpush1.msra.mxu0 0.0
      %581 = vmatprep.subr.mxu0 0.0
      %582 = vmatpush1.msra.mxu0 0.0
      %583 = vmatprep.subr.mxu0 0.0
      %584 = vmatpush1.msra.mxu0 0.0
      %585 = vmatprep.subr.mxu0 0.0
      %586 = vmatpush1.msra.mxu0 0.0
      %587 = vmatprep.subr.mxu0 0.0
      %588 = vmatpush1.msra.mxu0 0.0
      %589 = vmatprep.subr.mxu0 0.0
      %590 = vmatpush1.msra.mxu0 0.0
      %591 = vmatprep.subr.mxu0 0.0
      %592 = vmatpush1.msra.mxu0 0.0
      %593 = vmatprep.subr.mxu0 0.0
      %594 = vmatpush1.msra.mxu0 0.0
      %595 = vmatprep.subr.mxu0 0.0
      %596 = vmatpush1.msra.mxu0 0.0
      %597 = vmatprep.mubr.f32.mxu0 0.0
      %598 = vmatmul.mubr.f32.gmra.mrb[0].mxu0 %v528
      %v599 = vpop.f32.mrb[0].mxu0
      %v600 = vadd.f32 0.0, %v599
      %v601 = vpop.f32.mrb[0].mxu0
      %602 = vmatprep.mubr.f32.mxu0 0.0
      %603 = vmatmul.mubr.f32.gmra.mrb[0].mxu0 %v531
      %v604 = vpop.f32.mrb[0].mxu0
      %v605 = vadd.f32 0.0, %v604
      %v606 = vpop.f32.mrb[0].mxu0
      %607 = vdwg.mxu0
      %v608 = vld [vmem:[%s384] sm:$0xf]
      %v609 = vld [vmem:[%s397] sm:$0x7]
      %v610 = vlaneseq
      %v611 = vshrl.u32 %v610, 7
      %v612 = vsub.s32 3, %v611
      %v613 = vrot.slane %v608, %v612
      %v614 = vmul.f32 %v600, %v613
      %v615 = vmul.f32 %v605, %v613
      %v616 = vlaneseq
      %v617 = vshrl.u32 %v616, 7
      %v618 = vadd.s32 %v617, 8
      %v619 = vrot.slane %v600, 7
      %v620 = vrot.slane %v605, 7
      %vm621 = vcmp.lt.s32.totalorder %v617, 1
      %v622 = vsel %vm621, %v619, %v620
      %v623 = vsel %vm621, %v620, %v619
      %vm624 = vcmp.ge.s32.totalorder %v617, 1
      %vm625 = vcmp.ge.s32.totalorder %v618, 1
      %v626 = vsel %vm624, %v623, 0.0
      %v627 = vsel %vm625, %v622, 0.0
      %v628 = vlaneseq
      %v629 = vshrl.u32 %v628, 7
      %v630 = vsub.s32 2, %v629
      %v631 = vrot.slane %v608, %v630
      %v632 = vmul.f32 %v626, %v631
      %v633 = vmul.f32 %v627, %v631
      %v634 = vadd.f32 %v614, %v632
      %v635 = vadd.f32 %v615, %v633
      %v636 = vrot.slane %v600, 6
      %v637 = vrot.slane %v605, 6
      %vm638 = vcmp.lt.s32.totalorder %v617, 2
      %v639 = vsel %vm638, %v636, %v637
      %v640 = vsel %vm638, %v637, %v636
      %vm641 = vcmp.ge.s32.totalorder %v617, 2
      %vm642 = vcmp.ge.s32.totalorder %v618, 2
      %v643 = vsel %vm641, %v640, 0.0
      %v644 = vsel %vm642, %v639, 0.0
      %v645 = vlaneseq
      %v646 = vshrl.u32 %v645, 7
      %v647 = vsub.s32 1, %v646
      %v648 = vrot.slane %v608, %v647
      %v649 = vmul.f32 %v643, %v648
      %v650 = vmul.f32 %v644, %v648
      %v651 = vadd.f32 %v634, %v649
      %v652 = vadd.f32 %v635, %v650
      %v653 = vrot.slane %v600, 5
      %v654 = vrot.slane %v605, 5
      %vm655 = vcmp.lt.s32.totalorder %v617, 3
      %v656 = vsel %vm655, %v653, %v654
      %v657 = vsel %vm655, %v654, %v653
      %vm658 = vcmp.ge.s32.totalorder %v617, 3
      %vm659 = vcmp.ge.s32.totalorder %v618, 3
      %v660 = vsel %vm658, %v657, 0.0
      %v661 = vsel %vm659, %v656, 0.0
      %v662 = vlaneseq
      %v663 = vshrl.u32 %v662, 7
      %v664 = vsub.s32 0, %v663
      %v665 = vrot.slane %v608, %v664
      %v666 = vmul.f32 %v660, %v665
      %v667 = vmul.f32 %v661, %v665
      %v668 = vadd.f32 %v651, %v666
      %v669 = vadd.f32 %v652, %v667
      %v670 = vlaneseq
      %v671 = vshrl.u32 %v670, 7
      %v672 = vsub.s32 0, %v671
      %v673 = vrot.slane %v609, %v672
      %v674 = vadd.f32 %v668, %v673
      %v675 = vadd.f32 %v669, %v673
      %v676 = vxor.u32 %v674, 2147483648
      %v677 = vxor.u32 %v675, 2147483648
      %v678 = vmul.f32 %v676, 1.442695
      %v679 = vpow.pop %v678
      %v680 = vmul.f32 %v677, 1.442695
      %v681 = vpow.pop %v680
      %v682 = vadd.f32 %v679, 1.0
      %v683 = vadd.f32 %v681, 1.0
      %v684 = vrcp.pop %v682
      %v685 = vmul.f32 1.0, %v684
      %v686 = vrcp.pop %v683
      %v687 = vmul.f32 1.0, %v686
      %v688 = vmul.f32 %v674, %v685
      %v689 = vmul.f32 %v675, %v687
      %v690 = vld [vmem:[%s389] sm:$0xff]
      %v691 = vld [vmem:[%s389 + $0x8] sm:$0xff]
      %v692 = vld [vmem:[%s389 + $0x10] sm:$0xff]
      %v693 = vld [vmem:[%s389 + $0x18] sm:$0xff]
      %vm694 = vcmask 261120
      %v696 = vsel %vm694, %v688, 0
      %v699 = vsel %vm694, %v689, 0
      %701 = vmatprep.subr.mxu0 0.0
      %702 = vmatpush1.msra.mxu0 %v690
      %703 = vmatprep.subr.mxu0 0.0
      %704 = vmatpush1.msra.mxu0 %v691
      %705 = vmatprep.subr.mxu0 0.0
      %706 = vmatpush1.msra.mxu0 %v692
      %707 = vmatprep.subr.mxu0 0.0
      %708 = vmatpush1.msra.mxu0 %v693
      %709 = vmatprep.subr.mxu0 0.0
      %710 = vmatpush1.msra.mxu0 0.0
      %711 = vmatprep.subr.mxu0 0.0
      %712 = vmatpush1.msra.mxu0 0.0
      %713 = vmatprep.subr.mxu0 0.0
      %714 = vmatpush1.msra.mxu0 0.0
      %715 = vmatprep.subr.mxu0 0.0
      %716 = vmatpush1.msra.mxu0 0.0
      %717 = vmatprep.subr.mxu0 0.0
      %718 = vmatpush1.msra.mxu0 0.0
      %719 = vmatprep.subr.mxu0 0.0
      %720 = vmatpush1.msra.mxu0 0.0
      %721 = vmatprep.subr.mxu0 0.0
      %722 = vmatpush1.msra.mxu0 0.0
      %723 = vmatprep.subr.mxu0 0.0
      %724 = vmatpush1.msra.mxu0 0.0
      %725 = vmatprep.subr.mxu0 0.0
      %726 = vmatpush1.msra.mxu0 0.0
      %727 = vmatprep.subr.mxu0 0.0
      %728 = vmatpush1.msra.mxu0 0.0
      %729 = vmatprep.subr.mxu0 0.0
      %730 = vmatpush1.msra.mxu0 0.0
      %731 = vmatprep.subr.mxu0 0.0
      %732 = vmatpush1.msra.mxu0 0.0
      %733 = vmatprep.subr.mxu0 0.0
      %734 = vmatpush1.msra.mxu0 0.0
      %735 = vmatprep.subr.mxu0 0.0
      %736 = vmatpush1.msra.mxu0 0.0
      %737 = vmatprep.subr.mxu0 0.0
      %738 = vmatpush1.msra.mxu0 0.0
      %739 = vmatprep.subr.mxu0 0.0
      %740 = vmatpush1.msra.mxu0 0.0
      %741 = vmatprep.subr.mxu0 0.0
      %742 = vmatpush1.msra.mxu0 0.0
      %743 = vmatprep.subr.mxu0 0.0
      %744 = vmatpush1.msra.mxu0 0.0
      %745 = vmatprep.subr.mxu0 0.0
      %746 = vmatpush1.msra.mxu0 0.0
      %747 = vmatprep.subr.mxu0 0.0
      %748 = vmatpush1.msra.mxu0 0.0
      %749 = vmatprep.subr.mxu0 0.0
      %750 = vmatpush1.msra.mxu0 0.0
      %751 = vmatprep.subr.mxu0 0.0
      %752 = vmatpush1.msra.mxu0 0.0
      %753 = vmatprep.subr.mxu0 0.0
      %754 = vmatpush1.msra.mxu0 0.0
      %755 = vmatprep.subr.mxu0 0.0
      %756 = vmatpush1.msra.mxu0 0.0
      %757 = vmatprep.subr.mxu0 0.0
      %758 = vmatpush1.msra.mxu0 0.0
      %759 = vmatprep.subr.mxu0 0.0
      %760 = vmatpush1.msra.mxu0 0.0
      %761 = vmatprep.subr.mxu0 0.0
      %762 = vmatpush1.msra.mxu0 0.0
      %763 = vmatprep.subr.mxu0 0.0
      %764 = vmatpush1.msra.mxu0 0.0
      %765 = vmatprep.mubr.f32.mxu0 0.0
      %766 = vmatmul.mubr.f32.gmra.mrb[0].mxu0 %v696
      %v767 = vpop.f32.mrb[0].mxu0
      %v768 = vadd.f32 0.0, %v767
      %v769 = vpop.f32.mrb[0].mxu0
      %770 = vmatprep.mubr.f32.mxu0 0.0
      %771 = vmatmul.mubr.f32.gmra.mrb[0].mxu0 %v699
      %v772 = vpop.f32.mrb[0].mxu0
      %v773 = vadd.f32 0.0, %v772
      %v774 = vpop.f32.mrb[0].mxu0
      %775 = vdwg.mxu0
      %v776 = vlaneseq
      %v777 = vshrl.u32 %v776, 7
      %v778 = vsub.s32 1, %v777
      %v779 = vrot.slane %v609, %v778
      %v780 = vadd.f32 %v768, %v779
      %v781 = vadd.f32 %v773, %v779
      %v782 = vmax.f32 %v780, 0.0
      %v783 = vmax.f32 %v781, 0.0
      %v784 = vand.u32 2147483647, %v780
      %v785 = vand.u32 2147483647, %v781
      %v786 = vsub.f32 0.0, %v784
      %v787 = vsub.f32 0.0, %v785
      %v788 = vmul.f32 %v786, 1.442695
      %v789 = vpow.pop %v788
      %v790 = vmul.f32 %v787, 1.442695
      %v791 = vpow.pop %v790
      %v792 = vadd.f32 %v789, 1.0
      %v793 = vadd.f32 %v791, 1.0
      %v794 = vlog2.pop %v792
      %v795 = vmul.f32 %v794, 0.6931472
      %v796 = vlog2.pop %v793
      %v797 = vmul.f32 %v796, 0.6931472
      %v798 = vadd.f32 %v782, %v795
      %v799 = vadd.f32 %v783, %v797
      %800 = vst.msk [vmem:[#allocation3] sm:$0xff] %vm694, %v798
      %801 = vst.msk [vmem:[#allocation3 + $0x8] sm:$0xff] %vm694, %v799
      %v802 = vmul.f32 %v798, %v688
      %v803 = vmul.f32 %v799, %v689
      %804 = vst.msk [vmem:[#allocation4] sm:$0xff] %vm694, %v802
      %805 = vst.msk [vmem:[#allocation4 + $0x8] sm:$0xff] %vm694, %v803
      %808 = vrot.lane.b32.xlu0 %v768, 96
      %v809 = vpop.permute.xlu0 %808
      %810 = vrot.lane.b32.xlu0 %v773, 96
      %v811 = vpop.permute.xlu0 %810
      %vm814 = vcmask 64512
      %815 = vst.msk [vmem:[#allocation5] sm:$0xff] %vm814, %v809
      %816 = vst.msk [vmem:[#allocation5 + $0x8] sm:$0xff] %vm814, %v811
      %817 = vrot.lane.b32.xlu0 %v768, 88
      %v818 = vpop.permute.xlu0 %817
      %819 = vrot.lane.b32.xlu0 %v773, 88
      %v820 = vpop.permute.xlu0 %819
      %823 = vst.msk [vmem:[#allocation6] sm:$0xff] %vm814, %v818
      %824 = vst.msk [vmem:[#allocation6 + $0x8] sm:$0xff] %vm814, %v820
      %v825 = vlaneseq
      %v826 = vshrl.u32 %v825, 7
      %v827 = vsub.s32 2, %v826
      %v828 = vrot.slane %v609, %v827
      %v829 = vmul.f32 %v688, %v828
      %v830 = vmul.f32 %v689, %v828
      %831 = vst.msk [vmem:[#allocation7] sm:$0xff] %vm694, %v829
      %832 = vst.msk [vmem:[#allocation7 + $0x8] sm:$0xff] %vm694, %v830
      %v833 = vld [vmem:[%s393] sm:$0xff]
      %v834 = vlaneseq
      %v835 = vand.u32 %v834, 127
      %vm836 = vcmp.eq.s32.totalorder %v617, %v835
      %v837 = vsel %vm836, 1.0, 0.0
      loop: start=0, step=1, limit=2
      $region57: #{bimamba_forward.1} parent=47 // loop_pre_header
        _
      $region58: #{bimamba_forward.1} parent=47 // loop_header
        %s839 = sphi 0, %s843
        %p840 = scmp.ge.s32.totalorder %s839, 2
        %v844 = vphi 0.0, %v1232
      $region59: #{bimamba_forward.1} parent=47 // loop_header_branch
        %842 = sbr.rel (%p840) target = $region63
      $region60: #{bimamba_forward.1} parent=47 // loop_body
        %s845 = smul.u32 %s839, 8
        %s846 = scalar_lea.vmem [#allocation3], %s845
        %v847 = vld [vmem:[%s846] sm:$0xff]
        %s848 = scalar_lea.vmem [#allocation4], %s845
        %v849 = vld [vmem:[%s848] sm:$0xff]
        %s850 = scalar_lea.vmem [#allocation5], %s845
        %v851 = vld [vmem:[%s850] sm:$0xff]
        %v853 = vsel %vm814, %v837, 0
        %v856 = vsel %vm814, %v851, 0
        %858 = vmatprep.subr.mxu0 0.0
        %859 = vmatpush1.xpose.msra.mxu0 %v856
        %860 = vmatprep.subr.mxu0 0.0
        %861 = vmatpush1.xpose.msra.mxu0 0.0
        %862 = vmatprep.subr.mxu0 0.0
        %863 = vmatpush1.xpose.msra.mxu0 0.0
        %864 = vmatprep.subr.mxu0 0.0
        %865 = vmatpush1.xpose.msra.mxu0 0.0
        %866 = vmatprep.subr.mxu0 0.0
        %867 = vmatpush1.xpose.msra.mxu0 0.0
        %868 = vmatprep.subr.mxu0 0.0
        %869 = vmatpush1.xpose.msra.mxu0 0.0
        %870 = vmatprep.subr.mxu0 0.0
        %871 = vmatpush1.xpose.msra.mxu0 0.0
        %872 = vmatprep.subr.mxu0 0.0
        %873 = vmatpush1.xpose.msra.mxu0 0.0
        %874 = vmatprep.subr.mxu0 0.0
        %875 = vmatpush1.xpose.msra.mxu0 0.0
        %876 = vmatprep.subr.mxu0 0.0
        %877 = vmatpush1.xpose.msra.mxu0 0.0
        %878 = vmatprep.subr.mxu0 0.0
        %879 = vmatpush1.xpose.msra.mxu0 0.0
        %880 = vmatprep.subr.mxu0 0.0
        %881 = vmatpush1.xpose.msra.mxu0 0.0
        %882 = vmatprep.subr.mxu0 0.0
        %883 = vmatpush1.xpose.msra.mxu0 0.0
        %884 = vmatprep.subr.mxu0 0.0
        %885 = vmatpush1.xpose.msra.mxu0 0.0
        %886 = vmatprep.subr.mxu0 0.0
        %887 = vmatpush1.xpose.msra.mxu0 0.0
        %888 = vmatprep.subr.mxu0 0.0
        %889 = vmatpush1.xpose.msra.mxu0 0.0
        %890 = vmatprep.subr.mxu0 0.0
        %891 = vmatpush1.xpose.msra.mxu0 0.0
        %892 = vmatprep.subr.mxu0 0.0
        %893 = vmatpush1.xpose.msra.mxu0 0.0
        %894 = vmatprep.subr.mxu0 0.0
        %895 = vmatpush1.xpose.msra.mxu0 0.0
        %896 = vmatprep.subr.mxu0 0.0
        %897 = vmatpush1.xpose.msra.mxu0 0.0
        %898 = vmatprep.subr.mxu0 0.0
        %899 = vmatpush1.xpose.msra.mxu0 0.0
        %900 = vmatprep.subr.mxu0 0.0
        %901 = vmatpush1.xpose.msra.mxu0 0.0
        %902 = vmatprep.subr.mxu0 0.0
        %903 = vmatpush1.xpose.msra.mxu0 0.0
        %904 = vmatprep.subr.mxu0 0.0
        %905 = vmatpush1.xpose.msra.mxu0 0.0
        %906 = vmatprep.subr.mxu0 0.0
        %907 = vmatpush1.xpose.msra.mxu0 0.0
        %908 = vmatprep.subr.mxu0 0.0
        %909 = vmatpush1.xpose.msra.mxu0 0.0
        %910 = vmatprep.subr.mxu0 0.0
        %911 = vmatpush1.xpose.msra.mxu0 0.0
        %912 = vmatprep.subr.mxu0 0.0
        %913 = vmatpush1.xpose.msra.mxu0 0.0
        %914 = vmatprep.subr.mxu0 0.0
        %915 = vmatpush1.xpose.msra.mxu0 0.0
        %916 = vmatprep.subr.mxu0 0.0
        %917 = vmatpush1.xpose.msra.mxu0 0.0
        %918 = vmatprep.subr.mxu0 0.0
        %919 = vmatpush1.xpose.msra.mxu0 0.0
        %920 = vmatprep.subr.mxu0 0.0
        %921 = vmatpush1.xpose.msra.mxu0 0.0
        %922 = vmatprep.mubr.f32.mxu0 0.0
        %923 = vmatmul.mubr.f32.gmra.mrb[0].mxu0 %v853
        %v924 = vpop.f32.mrb[0].mxu0
        %v925 = vadd.f32 0.0, %v924
        %v926 = vpop.f32.mrb[0].mxu0
        %927 = vdwg.mxu0
        %s928 = scalar_lea.vmem [#allocation6], %s845
        %v929 = vld [vmem:[%s928] sm:$0xff]
        %v931 = vsel %vm814, %v929, 0
        %933 = vmatprep.subr.mxu0 0.0
        %934 = vmatpush1.xpose.msra.mxu0 %v931
        %935 = vmatprep.subr.mxu0 0.0
        %936 = vmatpush1.xpose.msra.mxu0 0.0
        %937 = vmatprep.subr.mxu0 0.0
        %938 = vmatpush1.xpose.msra.mxu0 0.0
        %939 = vmatprep.subr.mxu0 0.0
        %940 = vmatpush1.xpose.msra.mxu0 0.0
        %941 = vmatprep.subr.mxu0 0.0
        %942 = vmatpush1.xpose.msra.mxu0 0.0
        %943 = vmatprep.subr.mxu0 0.0
        %944 = vmatpush1.xpose.msra.mxu0 0.0
        %945 = vmatprep.subr.mxu0 0.0
        %946 = vmatpush1.xpose.msra.mxu0 0.0
        %947 = vmatprep.subr.mxu0 0.0
        %948 = vmatpush1.xpose.msra.mxu0 0.0
        %949 = vmatprep.subr.mxu0 0.0
        %950 = vmatpush1.xpose.msra.mxu0 0.0
        %951 = vmatprep.subr.mxu0 0.0
        %952 = vmatpush1.xpose.msra.mxu0 0.0
        %953 = vmatprep.subr.mxu0 0.0
        %954 = vmatpush1.xpose.msra.mxu0 0.0
        %955 = vmatprep.subr.mxu0 0.0
        %956 = vmatpush1.xpose.msra.mxu0 0.0
        %957 = vmatprep.subr.mxu0 0.0
        %958 = vmatpush1.xpose.msra.mxu0 0.0
        %959 = vmatprep.subr.mxu0 0.0
        %960 = vmatpush1.xpose.msra.mxu0 0.0
        %961 = vmatprep.subr.mxu0 0.0
        %962 = vmatpush1.xpose.msra.mxu0 0.0
        %963 = vmatprep.subr.mxu0 0.0
        %964 = vmatpush1.xpose.msra.mxu0 0.0
        %965 = vmatprep.subr.mxu0 0.0
        %966 = vmatpush1.xpose.msra.mxu0 0.0
        %967 = vmatprep.subr.mxu0 0.0
        %968 = vmatpush1.xpose.msra.mxu0 0.0
        %969 = vmatprep.subr.mxu0 0.0
        %970 = vmatpush1.xpose.msra.mxu0 0.0
        %971 = vmatprep.subr.mxu0 0.0
        %972 = vmatpush1.xpose.msra.mxu0 0.0
        %973 = vmatprep.subr.mxu0 0.0
        %974 = vmatpush1.xpose.msra.mxu0 0.0
        %975 = vmatprep.subr.mxu0 0.0
        %976 = vmatpush1.xpose.msra.mxu0 0.0
        %977 = vmatprep.subr.mxu0 0.0
        %978 = vmatpush1.xpose.msra.mxu0 0.0
        %979 = vmatprep.subr.mxu0 0.0
        %980 = vmatpush1.xpose.msra.mxu0 0.0
        %981 = vmatprep.subr.mxu0 0.0
        %982 = vmatpush1.xpose.msra.mxu0 0.0
        %983 = vmatprep.subr.mxu0 0.0
        %984 = vmatpush1.xpose.msra.mxu0 0.0
        %985 = vmatprep.subr.mxu0 0.0
        %986 = vmatpush1.xpose.msra.mxu0 0.0
        %987 = vmatprep.subr.mxu0 0.0
        %988 = vmatpush1.xpose.msra.mxu0 0.0
        %989 = vmatprep.subr.mxu0 0.0
        %990 = vmatpush1.xpose.msra.mxu0 0.0
        %991 = vmatprep.subr.mxu0 0.0
        %992 = vmatpush1.xpose.msra.mxu0 0.0
        %993 = vmatprep.subr.mxu0 0.0
        %994 = vmatpush1.xpose.msra.mxu0 0.0
        %995 = vmatprep.subr.mxu0 0.0
        %996 = vmatpush1.xpose.msra.mxu0 0.0
        %997 = vmatprep.mubr.f32.mxu0 0.0
        %998 = vmatmul.mubr.f32.gmra.mrb[0].mxu0 %v853
        %v999 = vpop.f32.mrb[0].mxu0
        %v1000 = vadd.f32 0.0, %v999
        %v1001 = vpop.f32.mrb[0].mxu0
        %1002 = vdwg.mxu0
        %v1003 = vlaneseq
        %v1004 = vshrl.u32 %v1003, 7
        %v1005 = vsub.s32 0, %v1004
        %v1006 = vrot.slane %v847, %v1005
        %v1007 = vmul.f32 %v1006, %v833
        %v1008 = vmul.f32 %v1007, 1.442695
        %v1009 = vpow.pop %v1008
        %v1010 = vmul.f32 %v1009, %v844
        %1012 = vset.pattern.permute.xlu0 0
        %1013 = vperm.xlu0 %1012, %v925
        %v1014 = vpop.permute.xlu0 %1013
        %v1016 = vlaneseq
        %v1017 = vshrl.u32 %v1016, 7
        %v1018 = vsub.s32 0, %v1017
        %v1019 = vrot.slane %v849, %v1018
        %v1020 = vmul.f32 %v1014, %v1019
        %v1021 = vadd.f32 %v1010, %v1020
        %1023 = vset.pattern.permute.xlu0 0
        %1024 = vperm.xlu0 %1023, %v1000
        %v1025 = vpop.permute.xlu0 %1024
        %v1027 = vmul.f32 %v1025, %v1021
        %v1028 = vsel %vm694, %v1027, 0.0
        %v1029 = vrot.slane %v1028, 4
        %v1030 = vadd.f32 %v1028, %v1029
        %v1031 = vrot.slane %v1030, 2
        %v1032 = vadd.f32 %v1030, %v1031
        %v1033 = vrot.slane %v1032, 1
        %v1034 = vadd.f32 %v1032, %v1033
        %v1035 = vlaneseq
        %v1036 = vshrl.u32 %v1035, 7
        %v1037 = vsub.s32 1, %v1036
        %v1038 = vrot.slane %v847, %v1037
        %v1039 = vmul.f32 %v1038, %v833
        %v1040 = vmul.f32 %v1039, 1.442695
        %v1041 = vpow.pop %v1040
        %v1042 = vmul.f32 %v1041, %v1021
        %1043 = vset.pattern.permute.xlu0 1
        %1044 = vperm.xlu0 %1043, %v925
        %v1045 = vpop.permute.xlu0 %1044
        %v1047 = vlaneseq
        %v1048 = vshrl.u32 %v1047, 7
        %v1049 = vsub.s32 1, %v1048
        %v1050 = vrot.slane %v849, %v1049
        %v1051 = vmul.f32 %v1045, %v1050
        %v1052 = vadd.f32 %v1042, %v1051
        %1053 = vset.pattern.permute.xlu0 1
        %1054 = vperm.xlu0 %1053, %v1000
        %v1055 = vpop.permute.xlu0 %1054
        %v1057 = vmul.f32 %v1055, %v1052
        %v1058 = vsel %vm694, %v1057, 0.0
        %v1059 = vrot.slane %v1058, 4
        %v1060 = vadd.f32 %v1058, %v1059
        %v1061 = vrot.slane %v1060, 2
        %v1062 = vadd.f32 %v1060, %v1061
        %v1063 = vrot.slane %v1062, 1
        %v1064 = vadd.f32 %v1062, %v1063
        %v1065 = vlaneseq
        %v1066 = vshrl.u32 %v1065, 7
        %v1067 = vsub.s32 2, %v1066
        %v1068 = vrot.slane %v847, %v1067
        %v1069 = vmul.f32 %v1068, %v833
        %v1070 = vmul.f32 %v1069, 1.442695
        %v1071 = vpow.pop %v1070
        %v1072 = vmul.f32 %v1071, %v1052
        %1073 = vset.pattern.permute.xlu0 2
        %1074 = vperm.xlu0 %1073, %v925
        %v1075 = vpop.permute.xlu0 %1074
        %v1077 = vlaneseq
        %v1078 = vshrl.u32 %v1077, 7
        %v1079 = vsub.s32 2, %v1078
        %v1080 = vrot.slane %v849, %v1079
        %v1081 = vmul.f32 %v1075, %v1080
        %v1082 = vadd.f32 %v1072, %v1081
        %1083 = vset.pattern.permute.xlu0 2
        %1084 = vperm.xlu0 %1083, %v1000
        %v1085 = vpop.permute.xlu0 %1084
        %v1087 = vmul.f32 %v1085, %v1082
        %v1088 = vsel %vm694, %v1087, 0.0
        %v1089 = vrot.slane %v1088, 4
        %v1090 = vadd.f32 %v1088, %v1089
        %v1091 = vrot.slane %v1090, 2
        %v1092 = vadd.f32 %v1090, %v1091
        %v1093 = vrot.slane %v1092, 1
        %v1094 = vadd.f32 %v1092, %v1093
        %v1095 = vlaneseq
        %v1096 = vshrl.u32 %v1095, 7
        %v1097 = vsub.s32 3, %v1096
        %v1098 = vrot.slane %v847, %v1097
        %v1099 = vmul.f32 %v1098, %v833
        %v1100 = vmul.f32 %v1099, 1.442695
        %v1101 = vpow.pop %v1100
        %v1102 = vmul.f32 %v1101, %v1082
        %1103 = vset.pattern.permute.xlu0 3
        %1104 = vperm.xlu0 %1103, %v925
        %v1105 = vpop.permute.xlu0 %1104
        %v1107 = vlaneseq
        %v1108 = vshrl.u32 %v1107, 7
        %v1109 = vsub.s32 3, %v1108
        %v1110 = vrot.slane %v849, %v1109
        %v1111 = vmul.f32 %v1105, %v1110
        %v1112 = vadd.f32 %v1102, %v1111
        %1113 = vset.pattern.permute.xlu0 3
        %1114 = vperm.xlu0 %1113, %v1000
        %v1115 = vpop.permute.xlu0 %1114
        %v1117 = vmul.f32 %v1115, %v1112
        %v1118 = vsel %vm694, %v1117, 0.0
        %v1119 = vrot.slane %v1118, 4
        %v1120 = vadd.f32 %v1118, %v1119
        %v1121 = vrot.slane %v1120, 2
        %v1122 = vadd.f32 %v1120, %v1121
        %v1123 = vrot.slane %v1122, 1
        %v1124 = vadd.f32 %v1122, %v1123
        %v1125 = vlaneseq
        %v1126 = vshrl.u32 %v1125, 7
        %v1127 = vsub.s32 4, %v1126
        %v1128 = vrot.slane %v847, %v1127
        %v1129 = vmul.f32 %v1128, %v833
        %v1130 = vmul.f32 %v1129, 1.442695
        %v1131 = vpow.pop %v1130
        %v1132 = vmul.f32 %v1131, %v1112
        %1133 = vset.pattern.permute.xlu0 4
        %1134 = vperm.xlu0 %1133, %v925
        %v1135 = vpop.permute.xlu0 %1134
        %v1137 = vlaneseq
        %v1138 = vshrl.u32 %v1137, 7
        %v1139 = vsub.s32 4, %v1138
        %v1140 = vrot.slane %v849, %v1139
        %v1141 = vmul.f32 %v1135, %v1140
        %v1142 = vadd.f32 %v1132, %v1141
        %1143 = vset.pattern.permute.xlu0 4
        %1144 = vperm.xlu0 %1143, %v1000
        %v1145 = vpop.permute.xlu0 %1144
        %v1147 = vmul.f32 %v1145, %v1142
        %v1148 = vsel %vm694, %v1147, 0.0
        %v1149 = vrot.slane %v1148, 4
        %v1150 = vadd.f32 %v1148, %v1149
        %v1151 = vrot.slane %v1150, 2
        %v1152 = vadd.f32 %v1150, %v1151
        %v1153 = vrot.slane %v1152, 1
        %v1154 = vadd.f32 %v1152, %v1153
        %v1155 = vlaneseq
        %v1156 = vshrl.u32 %v1155, 7
        %v1157 = vsub.s32 5, %v1156
        %v1158 = vrot.slane %v847, %v1157
        %v1159 = vmul.f32 %v1158, %v833
        %v1160 = vmul.f32 %v1159, 1.442695
        %v1161 = vpow.pop %v1160
        %v1162 = vmul.f32 %v1161, %v1142
        %1163 = vset.pattern.permute.xlu0 5
        %1164 = vperm.xlu0 %1163, %v925
        %v1165 = vpop.permute.xlu0 %1164
        %v1167 = vlaneseq
        %v1168 = vshrl.u32 %v1167, 7
        %v1169 = vsub.s32 5, %v1168
        %v1170 = vrot.slane %v849, %v1169
        %v1171 = vmul.f32 %v1165, %v1170
        %v1172 = vadd.f32 %v1162, %v1171
        %1173 = vset.pattern.permute.xlu0 5
        %1174 = vperm.xlu0 %1173, %v1000
        %v1175 = vpop.permute.xlu0 %1174
        %v1177 = vmul.f32 %v1175, %v1172
        %v1178 = vsel %vm694, %v1177, 0.0
        %v1179 = vrot.slane %v1178, 4
        %v1180 = vadd.f32 %v1178, %v1179
        %v1181 = vrot.slane %v1180, 2
        %v1182 = vadd.f32 %v1180, %v1181
        %v1183 = vrot.slane %v1182, 1
        %v1184 = vadd.f32 %v1182, %v1183
        %v1185 = vlaneseq
        %v1186 = vshrl.u32 %v1185, 7
        %v1187 = vsub.s32 6, %v1186
        %v1188 = vrot.slane %v847, %v1187
        %v1189 = vmul.f32 %v1188, %v833
        %v1190 = vmul.f32 %v1189, 1.442695
        %v1191 = vpow.pop %v1190
        %v1192 = vmul.f32 %v1191, %v1172
        %1193 = vset.pattern.permute.xlu0 6
        %1194 = vperm.xlu0 %1193, %v925
        %v1195 = vpop.permute.xlu0 %1194
        %v1197 = vlaneseq
        %v1198 = vshrl.u32 %v1197, 7
        %v1199 = vsub.s32 6, %v1198
        %v1200 = vrot.slane %v849, %v1199
        %v1201 = vmul.f32 %v1195, %v1200
        %v1202 = vadd.f32 %v1192, %v1201
        %1203 = vset.pattern.permute.xlu0 6
        %1204 = vperm.xlu0 %1203, %v1000
        %v1205 = vpop.permute.xlu0 %1204
        %v1207 = vmul.f32 %v1205, %v1202
        %v1208 = vsel %vm694, %v1207, 0.0
        %v1209 = vrot.slane %v1208, 4
        %v1210 = vadd.f32 %v1208, %v1209
        %v1211 = vrot.slane %v1210, 2
        %v1212 = vadd.f32 %v1210, %v1211
        %v1213 = vrot.slane %v1212, 1
        %v1214 = vadd.f32 %v1212, %v1213
        %v1215 = vlaneseq
        %v1216 = vshrl.u32 %v1215, 7
        %v1217 = vsub.s32 7, %v1216
        %v1218 = vrot.slane %v847, %v1217
        %v1219 = vmul.f32 %v1218, %v833
        %v1220 = vmul.f32 %v1219, 1.442695
        %v1221 = vpow.pop %v1220
        %v1222 = vmul.f32 %v1221, %v1202
        %1223 = vset.pattern.permute.xlu0 7
        %1224 = vperm.xlu0 %1223, %v925
        %v1225 = vpop.permute.xlu0 %1224
        %v1227 = vlaneseq
        %v1228 = vshrl.u32 %v1227, 7
        %v1229 = vsub.s32 7, %v1228
        %v1230 = vrot.slane %v849, %v1229
        %v1231 = vmul.f32 %v1225, %v1230
        %v1232 = vadd.f32 %v1222, %v1231
        %1233 = vset.pattern.permute.xlu0 7
        %1234 = vperm.xlu0 %1233, %v1000
        %v1235 = vpop.permute.xlu0 %1234
        %v1237 = vmul.f32 %v1235, %v1232
        %v1238 = vsel %vm694, %v1237, 0.0
        %v1239 = vrot.slane %v1238, 4
        %v1240 = vadd.f32 %v1238, %v1239
        %v1241 = vrot.slane %v1240, 2
        %v1242 = vadd.f32 %v1240, %v1241
        %v1243 = vrot.slane %v1242, 1
        %v1244 = vadd.f32 %v1242, %v1243
        %s1245 = scalar_lea.vmem [#allocation7], %s845
        %v1246 = vld [vmem:[%s1245] sm:$0xff]
        %vm1247 = vcmask 1040384
        %v1248 = vsel %vm1247, %v1034, %v1064
        %vm1249 = vcmask 1041408
        %v1250 = vsel %vm1249, %v1248, %v1094
        %vm1251 = vcmask 1042432
        %v1252 = vsel %vm1251, %v1250, %v1124
        %vm1253 = vcmask 1043456
        %v1254 = vsel %vm1253, %v1252, %v1154
        %vm1255 = vcmask 1044480
        %v1256 = vsel %vm1255, %v1254, %v1184
        %vm1257 = vcmask 1045504
        %v1258 = vsel %vm1257, %v1256, %v1214
        %vm1259 = vcmask 1046528
        %v1260 = vsel %vm1259, %v1258, %v1244
        %v1261 = vadd.f32 %v1246, %v1260
        %1262 = vst.msk [vmem:[%s1245] sm:$0xff] %vm694, %v1261
      $region61: #{bimamba_forward.1} parent=47 // loop_footer
        %s843 = sadd.s32 1, %s839
      $region62: #{bimamba_forward.1} parent=47 // loop_footer_branch
        %838 = sbr.rel target = $region58
      $region63: #{bimamba_forward.1} parent=47 // loop_exit
        _
      %v1263 = vld [vmem:[#allocation7] sm:$0xff]
      %v1264 = vld [vmem:[#allocation7 + $0x8] sm:$0xff]
      %v1265 = vxor.u32 %v600, 2147483648
      %v1266 = vxor.u32 %v605, 2147483648
      %v1267 = vmul.f32 %v1265, 1.442695
      %v1268 = vpow.pop %v1267
      %v1269 = vmul.f32 %v1266, 1.442695
      %v1270 = vpow.pop %v1269
      %v1271 = vadd.f32 %v1268, 1.0
      %v1272 = vadd.f32 %v1270, 1.0
      %v1273 = vrcp.pop %v1271
      %v1274 = vmul.f32 1.0, %v1273
      %v1275 = vrcp.pop %v1272
      %v1276 = vmul.f32 1.0, %v1275
      %v1277 = vmul.f32 %v600, %v1274
      %v1278 = vmul.f32 %v605, %v1276
      %1281 = vrot.lane.b32.xlu0 %v1277, 96
      %v1282 = vpop.permute.xlu0 %1281
      %1283 = vrot.lane.b32.xlu0 %v1278, 96
      %v1284 = vpop.permute.xlu0 %1283
      %v1287 = vmul.f32 %v1263, %v1282
      %v1288 = vmul.f32 %v1264, %v1284
      %v1289 = vld [vmem:[%s402] sm:$0xff]
      %v1290 = vld [vmem:[%s402 + $0x8] sm:$0xff]
      %v1291 = vld [vmem:[%s402 + $0x10] sm:$0xff]
      %v1292 = vld [vmem:[%s402 + $0x18] sm:$0xff]
      %v1294 = vsel %vm694, %v1287, 0
      %v1297 = vsel %vm694, %v1288, 0
      %1299 = vmatprep.subr.mxu0 0.0
      %1300 = vmatpush1.msra.mxu0 %v1289
      %1301 = vmatprep.subr.mxu0 0.0
      %1302 = vmatpush1.msra.mxu0 %v1290
      %1303 = vmatprep.subr.mxu0 0.0
      %1304 = vmatpush1.msra.mxu0 %v1291
      %1305 = vmatprep.subr.mxu0 0.0
      %1306 = vmatpush1.msra.mxu0 %v1292
      %1307 = vmatprep.subr.mxu0 0.0
      %1308 = vmatpush1.msra.mxu0 0.0
      %1309 = vmatprep.subr.mxu0 0.0
      %1310 = vmatpush1.msra.mxu0 0.0
      %1311 = vmatprep.subr.mxu0 0.0
      %1312 = vmatpush1.msra.mxu0 0.0
      %1313 = vmatprep.subr.mxu0 0.0
      %1314 = vmatpush1.msra.mxu0 0.0
      %1315 = vmatprep.subr.mxu0 0.0
      %1316 = vmatpush1.msra.mxu0 0.0
      %1317 = vmatprep.subr.mxu0 0.0
      %1318 = vmatpush1.msra.mxu0 0.0
      %1319 = vmatprep.subr.mxu0 0.0
      %1320 = vmatpush1.msra.mxu0 0.0
      %1321 = vmatprep.subr.mxu0 0.0
      %1322 = vmatpush1.msra.mxu0 0.0
      %1323 = vmatprep.subr.mxu0 0.0
      %1324 = vmatpush1.msra.mxu0 0.0
      %1325 = vmatprep.subr.mxu0 0.0
      %1326 = vmatpush1.msra.mxu0 0.0
      %1327 = vmatprep.subr.mxu0 0.0
      %1328 = vmatpush1.msra.mxu0 0.0
      %1329 = vmatprep.subr.mxu0 0.0
      %1330 = vmatpush1.msra.mxu0 0.0
      %1331 = vmatprep.subr.mxu0 0.0
      %1332 = vmatpush1.msra.mxu0 0.0
      %1333 = vmatprep.subr.mxu0 0.0
      %1334 = vmatpush1.msra.mxu0 0.0
      %1335 = vmatprep.subr.mxu0 0.0
      %1336 = vmatpush1.msra.mxu0 0.0
      %1337 = vmatprep.subr.mxu0 0.0
      %1338 = vmatpush1.msra.mxu0 0.0
      %1339 = vmatprep.subr.mxu0 0.0
      %1340 = vmatpush1.msra.mxu0 0.0
      %1341 = vmatprep.subr.mxu0 0.0
      %1342 = vmatpush1.msra.mxu0 0.0
      %1343 = vmatprep.subr.mxu0 0.0
      %1344 = vmatpush1.msra.mxu0 0.0
      %1345 = vmatprep.subr.mxu0 0.0
      %1346 = vmatpush1.msra.mxu0 0.0
      %1347 = vmatprep.subr.mxu0 0.0
      %1348 = vmatpush1.msra.mxu0 0.0
      %1349 = vmatprep.subr.mxu0 0.0
      %1350 = vmatpush1.msra.mxu0 0.0
      %1351 = vmatprep.subr.mxu0 0.0
      %1352 = vmatpush1.msra.mxu0 0.0
      %1353 = vmatprep.subr.mxu0 0.0
      %1354 = vmatpush1.msra.mxu0 0.0
      %1355 = vmatprep.subr.mxu0 0.0
      %1356 = vmatpush1.msra.mxu0 0.0
      %1357 = vmatprep.subr.mxu0 0.0
      %1358 = vmatpush1.msra.mxu0 0.0
      %1359 = vmatprep.subr.mxu0 0.0
      %1360 = vmatpush1.msra.mxu0 0.0
      %1361 = vmatprep.subr.mxu0 0.0
      %1362 = vmatpush1.msra.mxu0 0.0
      %1363 = vmatprep.mubr.f32.mxu0 0.0
      %1364 = vmatmul.mubr.f32.gmra.mrb[0].mxu0 %v1294
      %v1365 = vpop.f32.mrb[0].mxu0
      %v1366 = vadd.f32 0.0, %v1365
      %v1367 = vpop.f32.mrb[0].mxu0
      %1368 = vmatprep.mubr.f32.mxu0 0.0
      %1369 = vmatmul.mubr.f32.gmra.mrb[0].mxu0 %v1297
      %v1370 = vpop.f32.mrb[0].mxu0
      %v1371 = vadd.f32 0.0, %v1370
      %v1372 = vpop.f32.mrb[0].mxu0
      %1373 = vdwg.mxu0
      // Predicated region
      $region64: #{bimamba_forward.1} parent=47 // pred_check
        %p1374 = pneg %p412
      $region65: #{bimamba_forward.1} parent=47 // pred_check_branch
        %1376 = sbr.rel (%p1374) target = $region67
      $region66: #{bimamba_forward.1} parent=47 // pred_region
        %1377 = vst.msk [vmem:[%s411] sm:$0xff] %vm526, %v1366
        %1378 = vst.msk [vmem:[%s411 + $0x8] sm:$0xff] %vm526, %v1371
      $region67: #{bimamba_forward.1} parent=47 // pred_fallthru
        _
      // Predicated region
      $region68: #{bimamba_forward.1} parent=47 // pred_check
        %p1379 = pneg %p421
      $region69: #{bimamba_forward.1} parent=47 // pred_check_branch
        %1381 = sbr.rel (%p1379) target = $region71
      $region70: #{bimamba_forward.1} parent=47 // pred_region
        %v1382 = vadd.s32 %v617, %v835
        %v1383 = vadd.s32 %v618, %v835
        %vm1384 = vcmp.eq.s32.totalorder %v1382, 15
        %vm1385 = vcmp.eq.s32.totalorder %v1383, 15
        %v1386 = vsel %vm1384, 1.0, 0.0
        %v1387 = vsel %vm1385, 1.0, 0.0
        %v1389 = vsel %vm526, %v1386, 0
        %v1392 = vsel %vm526, %v1387, 0
        %1394 = vmatprep.subr.mxu0 0.0
        %1395 = vmatpush1.msra.mxu0 %v1366
        %1396 = vmatprep.subr.mxu0 0.0
        %1397 = vmatpush1.msra.mxu0 %v1371
        %1398 = vmatprep.subr.mxu0 0.0
        %1399 = vmatpush1.msra.mxu0 0.0
        %1400 = vmatprep.subr.mxu0 0.0
        %1401 = vmatpush1.msra.mxu0 0.0
        %1402 = vmatprep.subr.mxu0 0.0
        %1403 = vmatpush1.msra.mxu0 0.0
        %1404 = vmatprep.subr.mxu0 0.0
        %1405 = vmatpush1.msra.mxu0 0.0
        %1406 = vmatprep.subr.mxu0 0.0
        %1407 = vmatpush1.msra.mxu0 0.0
        %1408 = vmatprep.subr.mxu0 0.0
        %1409 = vmatpush1.msra.mxu0 0.0
        %1410 = vmatprep.subr.mxu0 0.0
        %1411 = vmatpush1.msra.mxu0 0.0
        %1412 = vmatprep.subr.mxu0 0.0
        %1413 = vmatpush1.msra.mxu0 0.0
        %1414 = vmatprep.subr.mxu0 0.0
        %1415 = vmatpush1.msra.mxu0 0.0
        %1416 = vmatprep.subr.mxu0 0.0
        %1417 = vmatpush1.msra.mxu0 0.0
        %1418 = vmatprep.subr.mxu0 0.0
        %1419 = vmatpush1.msra.mxu0 0.0
        %1420 = vmatprep.subr.mxu0 0.0
        %1421 = vmatpush1.msra.mxu0 0.0
        %1422 = vmatprep.subr.mxu0 0.0
        %1423 = vmatpush1.msra.mxu0 0.0
        %1424 = vmatprep.subr.mxu0 0.0
        %1425 = vmatpush1.msra.mxu0 0.0
        %1426 = vmatprep.subr.mxu0 0.0
        %1427 = vmatpush1.msra.mxu0 0.0
        %1428 = vmatprep.subr.mxu0 0.0
        %1429 = vmatpush1.msra.mxu0 0.0
        %1430 = vmatprep.subr.mxu0 0.0
        %1431 = vmatpush1.msra.mxu0 0.0
        %1432 = vmatprep.subr.mxu0 0.0
        %1433 = vmatpush1.msra.mxu0 0.0
        %1434 = vmatprep.subr.mxu0 0.0
        %1435 = vmatpush1.msra.mxu0 0.0
        %1436 = vmatprep.subr.mxu0 0.0
        %1437 = vmatpush1.msra.mxu0 0.0
        %1438 = vmatprep.subr.mxu0 0.0
        %1439 = vmatpush1.msra.mxu0 0.0
        %1440 = vmatprep.subr.mxu0 0.0
        %1441 = vmatpush1.msra.mxu0 0.0
        %1442 = vmatprep.subr.mxu0 0.0
        %1443 = vmatpush1.msra.mxu0 0.0
        %1444 = vmatprep.subr.mxu0 0.0
        %1445 = vmatpush1.msra.mxu0 0.0
        %1446 = vmatprep.subr.mxu0 0.0
        %1447 = vmatpush1.msra.mxu0 0.0
        %1448 = vmatprep.subr.mxu0 0.0
        %1449 = vmatpush1.msra.mxu0 0.0
        %1450 = vmatprep.subr.mxu0 0.0
        %1451 = vmatpush1.msra.mxu0 0.0
        %1452 = vmatprep.subr.mxu0 0.0
        %1453 = vmatpush1.msra.mxu0 0.0
        %1454 = vmatprep.subr.mxu0 0.0
        %1455 = vmatpush1.msra.mxu0 0.0
        %1456 = vmatprep.subr.mxu0 0.0
        %1457 = vmatpush1.msra.mxu0 0.0
        %1458 = vmatprep.mubr.f32.mxu0 0.0
        %1459 = vmatmul.mubr.f32.gmra.mrb[0].mxu0 %v1389
        %v1460 = vpop.f32.mrb[0].mxu0
        %v1461 = vadd.f32 0.0, %v1460
        %v1462 = vpop.f32.mrb[0].mxu0
        %1463 = vmatprep.mubr.f32.mxu0 0.0
        %1464 = vmatmul.mubr.f32.gmra.mrb[0].mxu0 %v1392
        %v1465 = vpop.f32.mrb[0].mxu0
        %v1466 = vadd.f32 0.0, %v1465
        %v1467 = vpop.f32.mrb[0].mxu0
        %1468 = vdwg.mxu0
        %1469 = vst.msk [vmem:[%s411] sm:$0xff] %vm526, %v1461
        %1470 = vst.msk [vmem:[%s411 + $0x8] sm:$0xff] %vm526, %v1466
      $region71: #{bimamba_forward.1} parent=47 // pred_fallthru
        _
      %p1471 = scmp.lt.s32.totalorder %s22, 1
      %s1472 = scalar_select %p1471, %s22, 1
      %p1473 = scmp.lt.s32.totalorder %s23, 1
      %s1474 = scalar_select %p1473, %s23, 1
      %s1475 = smul.addr %s1474, 2
      %s1476 = smul.addr %s1472, 4
      %s1477 = sadd.s32 %s1475, %s1476
      %s1478 = smul.addr %s1477, 8
      %s1479 = scalar_lea.vmem %s7, %s1478
      // Predicated region
      $region72: #{bimamba_forward.1} parent=47 // pred_check
        %p1480 = pneg %p232
      $region73: #{bimamba_forward.1} parent=47 // pred_check_branch
        %1482 = sbr.rel (%p1480) target = $region75
      $region74: #{bimamba_forward.1} parent=47 // pred_region
        _
      $region75: #{bimamba_forward.1} parent=47 // pred_fallthru
        _
    $region48: #{bimamba_forward.1} parent=5 // pred_fallthru
      _
    %p1483 = scmp.le.s32.totalorder 2, %s13
    // Predicated region
    $region76: #{bimamba_forward.1} parent=5 // pred_check
      %p1484 = pneg %p1483
    $region77: #{bimamba_forward.1} parent=5 // pred_check_branch
      %1486 = sbr.rel (%p1484) target = $region79
    $region78: #{bimamba_forward.1} parent=5 // pred_region
      %s1487 = ssub.s32 %s13, 2
      // Predicated region
      $region80: #{bimamba_forward.1} parent=78 // pred_check
        %p1488 = pneg %p238
      $region81: #{bimamba_forward.1} parent=78 // pred_check_branch
        %1490 = sbr.rel (%p1488) target = $region83
      $region82: #{bimamba_forward.1} parent=78 // pred_region
        %p1491 = scmp.lt.s32.totalorder %s24, 1
        %s1492 = scalar_select %p1491, %s24, 1
        %p1493 = scmp.lt.s32.totalorder %s25, 1
        %s1494 = scalar_select %p1493, %s25, 1
        %s1495 = smul.addr %s1494, 2
        %s1496 = smul.addr %s1492, 4
        %s1497 = sadd.s32 %s1495, %s1496
        %s1498 = smul.addr %s1497, 8
        %s1499 = scalar_lea.vmem %s7, %s1498
      $region83: #{bimamba_forward.1} parent=78 // pred_fallthru
        _
    $region79: #{bimamba_forward.1} parent=5 // pred_fallthru
      _
  $region6: #{bimamba_forward.1} parent=0 // loop_footer
    %s17 = sadd.s32 1, %s13
  $region7: #{bimamba_forward.1} parent=0 // loop_footer_branch
    %12 = sbr.rel target = $region3
  $region8: #{bimamba_forward.1} parent=0 // loop_exit
    _

</llo_original>
